<compile_context>
chip_gen: v6e
topology: v6e:2x2x1
jax: 0.10.0
libtpu: 0.0.40
codegen_flags: <defaults>
</compile_context>

<pallas_src>
import jax
import jax.numpy as jnp
from jax.experimental import pallas as pl
from jax.experimental.pallas import tpu as pltpu


def gated_cross_kernel(x_ref, wc_ref, b_ref, o_ref):
    # x_ref : (tb, Dp)       batch tile of the ORIGINAL input x0 (lane-dense)
    # wc_ref: (L, Dp, 2*Dp)  fused [W | Wg] weights (pre-transposed, bf16)
    # b_ref : (L, Dp)        biases (f32, zero in padded lanes)
    # o_ref : (tb, Dp)       output tile
    x0 = x_ref[...].astype(jnp.float32)
    xi = x0
    layer_num = wc_ref.shape[0]
    dp = x_ref.shape[1]
    for i in range(layer_num):  # static unroll; layer_num is small
        # One fused MXU matmul per layer: columns [0:Dp) -> f, [Dp:2Dp) -> gate.
        z = jnp.dot(xi.astype(wc_ref.dtype), wc_ref[i],
                    preferred_element_type=jnp.float32)       # (tb, 2*Dp) f32
        f = z[:, :dp] + b_ref[i][None, :]
        gate = jax.nn.sigmoid(z[:, dp:])
        xi = x0 * f * gate + xi                               # f32 epilogue
    o_ref[...] = xi.astype(o_ref.dtype)


def _round_up(n, m):
    return (n + m - 1) // m * m


def gated_cross_network(x, w_stack, wg_stack, b_stack, *,
                        max_tile_b=512, weight_dtype=jnp.bfloat16):
    """x: (B, D) f32. w_stack/wg_stack: (L, D, D) pre-transposed. b_stack: (L, D)."""
    B, D = x.shape
    L = w_stack.shape[0]

    # ---- Lane-dense padding of the feature dim (multiple of 128) -----------
    Dp = _round_up(D, 128)
    w_p = jnp.zeros((L, Dp, Dp), jnp.float32).at[:, :D, :D].set(w_stack)
    wg_p = jnp.zeros((L, Dp, Dp), jnp.float32).at[:, :D, :D].set(wg_stack)
    b_p = jnp.zeros((L, Dp), jnp.float32).at[:, :D].set(b_stack)
    # Fuse [W | Wg] along the output axis -> one matmul per layer.
    wc = jnp.concatenate([w_p, wg_p], axis=-1).astype(weight_dtype)  # (L,Dp,2Dp)

    # ---- Batch tiling: big tiles, but keep >=2 grid steps (v7x megacore) ---
    tb = min(max_tile_b, _round_up(B, 8))
    if B <= tb and B >= 16:
        tb = _round_up(pl.cdiv(B, 2), 8)
    Bp = _round_up(B, tb)
    x_p = jnp.zeros((Bp, Dp), x.dtype).at[:B, :D].set(x)
    grid = (Bp // tb,)

    # ---- VMEM budget (resident weights + double-buffered activation tiles) -
    est = (wc.size * wc.dtype.itemsize
           + b_p.size * b_p.dtype.itemsize
           + 4 * tb * Dp * x.dtype.itemsize)
    vmem_limit = int(min(64 * 1024 * 1024, max(32 * 1024 * 1024, 4 * est)))

    def build(single_buffer_weights):
        # Grid-invariant weights/bias: single-buffer them to halve their VMEM
        # footprint (matters on v7x's 64 MiB VMEM at realistic D).
        wkw = (dict(pipeline_mode=pl.Buffered(1))
               if single_buffer_weights else {})
        return pl.pallas_call(
            gated_cross_kernel,
            out_shape=jax.ShapeDtypeStruct((Bp, Dp), x.dtype),
            grid_spec=pltpu.PrefetchScalarGridSpec(
                num_scalar_prefetch=0,
                grid=grid,
                in_specs=[
                    pl.BlockSpec((tb, Dp), lambda i: (i, 0)),            # x0 tile
                    pl.BlockSpec((L, Dp, 2 * Dp), lambda i: (0, 0, 0),   # [W|Wg]
                                 **wkw),
                    pl.BlockSpec((L, Dp), lambda i: (0, 0), **wkw),      # bias
                ],
                out_specs=pl.BlockSpec((tb, Dp), lambda i: (i, 0)),
            ),
            compiler_params=pltpu.CompilerParams(
                dimension_semantics=("parallel",),
                vmem_limit_bytes=vmem_limit,
            ),
        )

    try:
        out = jax.block_until_ready(build(True)(x_p, wc, b_p))
    except Exception:
        # Fallback if this JAX build rejects Buffered(1) single-buffering.
        out = build(False)(x_p, wc, b_p)

    return out[:B, :D]


def gated_cross_reference(x, w_stack, wg_stack, b_stack):
    """Plain-JAX f32 reference mirroring the PyTorch forward exactly."""
    xi = x
    for i in range(w_stack.shape[0]):
        gate = jax.nn.sigmoid(xi @ wg_stack[i])
        f = xi @ w_stack[i] + b_stack[i]
        xi = x * f * gate + xi
    return xi


if __name__ == "__main__":
    key = jax.random.PRNGKey(0)
    batch, dim_in, layer_num = 16, 32, 3

    k_x, k_w, k_wg, k_b = jax.random.split(key, 4)

    x = jax.random.normal(k_x, (batch, dim_in), dtype=jnp.float32)

    # Synthetic params matching the module: Linear weights ~ U(-1/sqrt(D), 1/sqrt(D))
    # (stored pre-transposed so the kernel computes xi @ W == xi @ weight.T),
    # bias ~ U(0, 1) (the module calls nn.init.uniform_ on b).
    bound = 1.0 / jnp.sqrt(jnp.float32(dim_in))
    w_stack = jax.random.uniform(
        k_w, (layer_num, dim_in, dim_in), minval=-bound, maxval=bound,
        dtype=jnp.float32)
    wg_stack = jax.random.uniform(
        k_wg, (layer_num, dim_in, dim_in), minval=-bound, maxval=bound,
        dtype=jnp.float32)
    b_stack = jax.random.uniform(
        k_b, (layer_num, dim_in), minval=0.0, maxval=1.0, dtype=jnp.float32)

    out = gated_cross_network(x, w_stack, wg_stack, b_stack)
    out = jax.block_until_ready(out)

    ref = gated_cross_reference(x, w_stack, wg_stack, b_stack)
    assert out.shape == (batch, dim_in)
    # Weights run through the MXU in bf16 -> loosened tolerance vs f32 reference.
    assert jnp.allclose(out, ref, atol=5e-2, rtol=5e-2), "mismatch vs reference"

    print("KERNEL_OK")
</pallas_src>

<mosaic_0001>
module attributes {stable_mosaic.version = 11 : i64} {
  func.func @gated_cross_kernel(%arg0: i32, %arg1: memref<8x128xf32, #tpu.memory_space<vmem>>, %arg2: memref<3x128x256xbf16, #tpu.memory_space<vmem>>, %arg3: memref<3x128xf32, #tpu.memory_space<vmem>>, %arg4: memref<8x128xf32, #tpu.memory_space<vmem>>) attributes {dimension_semantics = [#tpu.dimension_semantics<parallel>], iteration_bounds = array<i64: 2>, scalar_prefetch = 0 : i64, scratch_operands = 0 : i64, tpu.core_type = #tpu.core_type<tc>, window_params = [{transform_indices = @transform_0, window_bounds = array<i64: 8, 128>}, {pipeline_mode = #tpu.pipeline_mode<synchronous>, transform_indices = @transform_1, window_bounds = array<i64: 3, 128, 256>}, {pipeline_mode = #tpu.pipeline_mode<synchronous>, transform_indices = @transform_2, window_bounds = array<i64: 3, 128>}, {transform_indices = @transform_3, window_bounds = array<i64: 8, 128>}]} {
    %c0 = arith.constant 0 : index
    %c0_0 = arith.constant 0 : index
    %0 = vector.load %arg1[%c0, %c0_0] : memref<8x128xf32, #tpu.memory_space<vmem>>, vector<8x128xf32>
    %1 = arith.truncf %0 : vector<8x128xf32> to vector<8x128xbf16>
    %c0_1 = arith.constant 0 : index
    %c0_2 = arith.constant 0 : index
    %c0_3 = arith.constant 0 : index
    %2 = vector.load %arg2[%c0_1, %c0_2, %c0_3] : memref<3x128x256xbf16, #tpu.memory_space<vmem>>, vector<1x128x256xbf16>
    %3 = vector.shape_cast %2 : vector<1x128x256xbf16> to vector<128x256xbf16>
    %cst = arith.constant dense<0.000000e+00> : vector<8x256xf32>
    %4 = tpu.matmul %1, %3, %cst {dimension_numbers = #tpu.dot_dimension_numbers<[1], [0], [0], [1], [0, 0, 1, 1], [], []>} : vector<8x128xbf16>, vector<128x256xbf16>, vector<8x256xf32> -> vector<8x256xf32>
    %5 = vector.extract_strided_slice %4 {offsets = [0, 0], sizes = [8, 128], strides = [1, 1]} : vector<8x256xf32> to vector<8x128xf32>
    %c0_4 = arith.constant 0 : index
    %c0_5 = arith.constant 0 : index
    %6 = vector.load %arg3[%c0_4, %c0_5] : memref<3x128xf32, #tpu.memory_space<vmem>>, vector<1x128xf32>
    %7 = vector.shape_cast %6 : vector<1x128xf32> to vector<128xf32>
    %8 = vector.shape_cast %7 : vector<128xf32> to vector<1x128xf32>
    %9 = vector.broadcast %8 : vector<1x128xf32> to vector<8x128xf32>
    %10 = arith.addf %5, %9 : vector<8x128xf32>
    %11 = vector.extract_strided_slice %4 {offsets = [0, 128], sizes = [8, 128], strides = [1, 1]} : vector<8x256xf32> to vector<8x128xf32>
    %12 = arith.negf %11 : vector<8x128xf32>
    %13 = math.exp %12 : vector<8x128xf32>
    %cst_6 = arith.constant 1.000000e+00 : f32
    %14 = vector.broadcast %cst_6 : f32 to vector<8x128xf32>
    %15 = arith.addf %14, %13 : vector<8x128xf32>
    %16 = arith.divf %14, %15 : vector<8x128xf32>
    %17 = arith.mulf %0, %10 : vector<8x128xf32>
    %18 = arith.mulf %17, %16 : vector<8x128xf32>
    %19 = arith.addf %18, %0 : vector<8x128xf32>
    %20 = arith.truncf %19 : vector<8x128xf32> to vector<8x128xbf16>
    %c1 = arith.constant 1 : index
    %c0_7 = arith.constant 0 : index
    %c0_8 = arith.constant 0 : index
    %21 = vector.load %arg2[%c1, %c0_7, %c0_8] : memref<3x128x256xbf16, #tpu.memory_space<vmem>>, vector<1x128x256xbf16>
    %22 = vector.shape_cast %21 : vector<1x128x256xbf16> to vector<128x256xbf16>
    %cst_9 = arith.constant dense<0.000000e+00> : vector<8x256xf32>
    %23 = tpu.matmul %20, %22, %cst_9 {dimension_numbers = #tpu.dot_dimension_numbers<[1], [0], [0], [1], [0, 0, 1, 1], [], []>} : vector<8x128xbf16>, vector<128x256xbf16>, vector<8x256xf32> -> vector<8x256xf32>
    %24 = vector.extract_strided_slice %23 {offsets = [0, 0], sizes = [8, 128], strides = [1, 1]} : vector<8x256xf32> to vector<8x128xf32>
    %c1_10 = arith.constant 1 : index
    %c0_11 = arith.constant 0 : index
    %25 = vector.load %arg3[%c1_10, %c0_11] : memref<3x128xf32, #tpu.memory_space<vmem>>, vector<1x128xf32>
    %26 = vector.shape_cast %25 : vector<1x128xf32> to vector<128xf32>
    %27 = vector.shape_cast %26 : vector<128xf32> to vector<1x128xf32>
    %28 = vector.broadcast %27 : vector<1x128xf32> to vector<8x128xf32>
    %29 = arith.addf %24, %28 : vector<8x128xf32>
    %30 = vector.extract_strided_slice %23 {offsets = [0, 128], sizes = [8, 128], strides = [1, 1]} : vector<8x256xf32> to vector<8x128xf32>
    %31 = arith.negf %30 : vector<8x128xf32>
    %32 = math.exp %31 : vector<8x128xf32>
    %cst_12 = arith.constant 1.000000e+00 : f32
    %33 = vector.broadcast %cst_12 : f32 to vector<8x128xf32>
    %34 = arith.addf %33, %32 : vector<8x128xf32>
    %35 = arith.divf %33, %34 : vector<8x128xf32>
    %36 = arith.mulf %0, %29 : vector<8x128xf32>
    %37 = arith.mulf %36, %35 : vector<8x128xf32>
    %38 = arith.addf %37, %19 : vector<8x128xf32>
    %39 = arith.truncf %38 : vector<8x128xf32> to vector<8x128xbf16>
    %c2 = arith.constant 2 : index
    %c0_13 = arith.constant 0 : index
    %c0_14 = arith.constant 0 : index
    %40 = vector.load %arg2[%c2, %c0_13, %c0_14] : memref<3x128x256xbf16, #tpu.memory_space<vmem>>, vector<1x128x256xbf16>
    %41 = vector.shape_cast %40 : vector<1x128x256xbf16> to vector<128x256xbf16>
    %cst_15 = arith.constant dense<0.000000e+00> : vector<8x256xf32>
    %42 = tpu.matmul %39, %41, %cst_15 {dimension_numbers = #tpu.dot_dimension_numbers<[1], [0], [0], [1], [0, 0, 1, 1], [], []>} : vector<8x128xbf16>, vector<128x256xbf16>, vector<8x256xf32> -> vector<8x256xf32>
    %43 = vector.extract_strided_slice %42 {offsets = [0, 0], sizes = [8, 128], strides = [1, 1]} : vector<8x256xf32> to vector<8x128xf32>
    %c2_16 = arith.constant 2 : index
    %c0_17 = arith.constant 0 : index
    %44 = vector.load %arg3[%c2_16, %c0_17] : memref<3x128xf32, #tpu.memory_space<vmem>>, vector<1x128xf32>
    %45 = vector.shape_cast %44 : vector<1x128xf32> to vector<128xf32>
    %46 = vector.shape_cast %45 : vector<128xf32> to vector<1x128xf32>
    %47 = vector.broadcast %46 : vector<1x128xf32> to vector<8x128xf32>
    %48 = arith.addf %43, %47 : vector<8x128xf32>
    %49 = vector.extract_strided_slice %42 {offsets = [0, 128], sizes = [8, 128], strides = [1, 1]} : vector<8x256xf32> to vector<8x128xf32>
    %50 = arith.negf %49 : vector<8x128xf32>
    %51 = math.exp %50 : vector<8x128xf32>
    %cst_18 = arith.constant 1.000000e+00 : f32
    %52 = vector.broadcast %cst_18 : f32 to vector<8x128xf32>
    %53 = arith.addf %52, %51 : vector<8x128xf32>
    %54 = arith.divf %52, %53 : vector<8x128xf32>
    %55 = arith.mulf %0, %48 : vector<8x128xf32>
    %56 = arith.mulf %55, %54 : vector<8x128xf32>
    %57 = arith.addf %56, %38 : vector<8x128xf32>
    %c0_19 = arith.constant 0 : index
    %c0_20 = arith.constant 0 : index
    %58 = vector.load %arg4[%c0_19, %c0_20] : memref<8x128xf32, #tpu.memory_space<vmem>>, vector<8x128xf32>
    tpu.vector_store %arg4[%c0_19, %c0_20], %57 {strides = array<i32>} : memref<8x128xf32, #tpu.memory_space<vmem>>, vector<8x128xf32>,
    return
  }
  func.func @transform_0(%arg0: i32) -> (i32, i32) {
    %c0_i32 = arith.constant 0 : i32
    %c0_i32_0 = arith.constant 0 : i32
    return %arg0, %c0_i32 : i32, i32
  }
  func.func @transform_1(%arg0: i32) -> (i32, i32, i32) {
    %c0_i32 = arith.constant 0 : i32
    %c0_i32_0 = arith.constant 0 : i32
    %c0_i32_1 = arith.constant 0 : i32
    %c0_i32_2 = arith.constant 0 : i32
    return %c0_i32, %c0_i32_0, %c0_i32_1 : i32, i32, i32
  }
  func.func @transform_2(%arg0: i32) -> (i32, i32) {
    %c0_i32 = arith.constant 0 : i32
    %c0_i32_0 = arith.constant 0 : i32
    %c0_i32_1 = arith.constant 0 : i32
    return %c0_i32, %c0_i32_0 : i32, i32
  }
  func.func @transform_3(%arg0: i32) -> (i32, i32) {
    %c0_i32 = arith.constant 0 : i32
    %c0_i32_0 = arith.constant 0 : i32
    return %arg0, %c0_i32 : i32, i32
  }
}

module attributes {stable_mosaic.version = 11 : i64} {
  func.func @gated_cross_kernel(%arg0: i32, %arg1: memref<8x128xf32, #tpu.memory_space<vmem>>, %arg2: memref<3x128x256xbf16, #tpu.memory_space<vmem>>, %arg3: memref<3x128xf32, #tpu.memory_space<vmem>>, %arg4: memref<8x128xf32, #tpu.memory_space<vmem>>) attributes {dimension_semantics = [#tpu.dimension_semantics<parallel>], iteration_bounds = array<i64: 2>, scalar_prefetch = 0 : i64, scratch_operands = 0 : i64, tpu.core_type = #tpu.core_type<tc>, window_params = [{transform_indices = @transform_0, window_bounds = array<i64: 8, 128>}, {pipeline_mode = #tpu.pipeline_mode<synchronous>, transform_indices = @transform_1, window_bounds = array<i64: 3, 128, 256>}, {pipeline_mode = #tpu.pipeline_mode<synchronous>, transform_indices = @transform_2, window_bounds = array<i64: 3, 128>}, {transform_indices = @transform_3, window_bounds = array<i64: 8, 128>}]} {
    %c0 = arith.constant 0 : index
    %c0_0 = arith.constant 0 : index
    %0 = vector.load %arg1[%c0, %c0_0] : memref<8x128xf32, #tpu.memory_space<vmem>>, vector<8x128xf32>
    %1 = arith.truncf %0 : vector<8x128xf32> to vector<8x128xbf16>
    %c0_1 = arith.constant 0 : index
    %c0_2 = arith.constant 0 : index
    %c0_3 = arith.constant 0 : index
    %2 = vector.load %arg2[%c0_1, %c0_2, %c0_3] : memref<3x128x256xbf16, #tpu.memory_space<vmem>>, vector<1x128x256xbf16>
    %3 = vector.shape_cast %2 : vector<1x128x256xbf16> to vector<128x256xbf16>
    %cst = arith.constant dense<0.000000e+00> : vector<8x256xf32>
    %4 = tpu.matmul %1, %3, %cst {dimension_numbers = #tpu.dot_dimension_numbers<[1], [0], [0], [1], [0, 0, 1, 1], [], []>} : vector<8x128xbf16>, vector<128x256xbf16>, vector<8x256xf32> -> vector<8x256xf32>
    %5 = vector.extract_strided_slice %4 {offsets = [0, 0], sizes = [8, 128], strides = [1, 1]} : vector<8x256xf32> to vector<8x128xf32>
    %c0_4 = arith.constant 0 : index
    %c0_5 = arith.constant 0 : index
    %6 = vector.load %arg3[%c0_4, %c0_5] : memref<3x128xf32, #tpu.memory_space<vmem>>, vector<1x128xf32>
    %7 = vector.shape_cast %6 : vector<1x128xf32> to vector<128xf32>
    %8 = vector.shape_cast %7 : vector<128xf32> to vector<1x128xf32>
    %9 = vector.broadcast %8 : vector<1x128xf32> to vector<8x128xf32>
    %10 = arith.addf %5, %9 : vector<8x128xf32>
    %11 = vector.extract_strided_slice %4 {offsets = [0, 128], sizes = [8, 128], strides = [1, 1]} : vector<8x256xf32> to vector<8x128xf32>
    %12 = arith.negf %11 : vector<8x128xf32>
    %13 = math.exp %12 : vector<8x128xf32>
    %cst_6 = arith.constant 1.000000e+00 : f32
    %14 = vector.broadcast %cst_6 : f32 to vector<8x128xf32>
    %15 = arith.addf %14, %13 : vector<8x128xf32>
    %16 = arith.divf %14, %15 : vector<8x128xf32>
    %17 = arith.mulf %0, %10 : vector<8x128xf32>
    %18 = arith.mulf %17, %16 : vector<8x128xf32>
    %19 = arith.addf %18, %0 : vector<8x128xf32>
    %20 = arith.truncf %19 : vector<8x128xf32> to vector<8x128xbf16>
    %c1 = arith.constant 1 : index
    %c0_7 = arith.constant 0 : index
    %c0_8 = arith.constant 0 : index
    %21 = vector.load %arg2[%c1, %c0_7, %c0_8] : memref<3x128x256xbf16, #tpu.memory_space<vmem>>, vector<1x128x256xbf16>
    %22 = vector.shape_cast %21 : vector<1x128x256xbf16> to vector<128x256xbf16>
    %cst_9 = arith.constant dense<0.000000e+00> : vector<8x256xf32>
    %23 = tpu.matmul %20, %22, %cst_9 {dimension_numbers = #tpu.dot_dimension_numbers<[1], [0], [0], [1], [0, 0, 1, 1], [], []>} : vector<8x128xbf16>, vector<128x256xbf16>, vector<8x256xf32> -> vector<8x256xf32>
    %24 = vector.extract_strided_slice %23 {offsets = [0, 0], sizes = [8, 128], strides = [1, 1]} : vector<8x256xf32> to vector<8x128xf32>
    %c1_10 = arith.constant 1 : index
    %c0_11 = arith.constant 0 : index
    %25 = vector.load %arg3[%c1_10, %c0_11] : memref<3x128xf32, #tpu.memory_space<vmem>>, vector<1x128xf32>
    %26 = vector.shape_cast %25 : vector<1x128xf32> to vector<128xf32>
    %27 = vector.shape_cast %26 : vector<128xf32> to vector<1x128xf32>
    %28 = vector.broadcast %27 : vector<1x128xf32> to vector<8x128xf32>
    %29 = arith.addf %24, %28 : vector<8x128xf32>
    %30 = vector.extract_strided_slice %23 {offsets = [0, 128], sizes = [8, 128], strides = [1, 1]} : vector<8x256xf32> to vector<8x128xf32>
    %31 = arith.negf %30 : vector<8x128xf32>
    %32 = math.exp %31 : vector<8x128xf32>
    %cst_12 = arith.constant 1.000000e+00 : f32
    %33 = vector.broadcast %cst_12 : f32 to vector<8x128xf32>
    %34 = arith.addf %33, %32 : vector<8x128xf32>
    %35 = arith.divf %33, %34 : vector<8x128xf32>
    %36 = arith.mulf %0, %29 : vector<8x128xf32>
    %37 = arith.mulf %36, %35 : vector<8x128xf32>
    %38 = arith.addf %37, %19 : vector<8x128xf32>
    %39 = arith.truncf %38 : vector<8x128xf32> to vector<8x128xbf16>
    %c2 = arith.constant 2 : index
    %c0_13 = arith.constant 0 : index
    %c0_14 = arith.constant 0 : index
    %40 = vector.load %arg2[%c2, %c0_13, %c0_14] : memref<3x128x256xbf16, #tpu.memory_space<vmem>>, vector<1x128x256xbf16>
    %41 = vector.shape_cast %40 : vector<1x128x256xbf16> to vector<128x256xbf16>
    %cst_15 = arith.constant dense<0.000000e+00> : vector<8x256xf32>
    %42 = tpu.matmul %39, %41, %cst_15 {dimension_numbers = #tpu.dot_dimension_numbers<[1], [0], [0], [1], [0, 0, 1, 1], [], []>} : vector<8x128xbf16>, vector<128x256xbf16>, vector<8x256xf32> -> vector<8x256xf32>
    %43 = vector.extract_strided_slice %42 {offsets = [0, 0], sizes = [8, 128], strides = [1, 1]} : vector<8x256xf32> to vector<8x128xf32>
    %c2_16 = arith.constant 2 : index
    %c0_17 = arith.constant 0 : index
    %44 = vector.load %arg3[%c2_16, %c0_17] : memref<3x128xf32, #tpu.memory_space<vmem>>, vector<1x128xf32>
    %45 = vector.shape_cast %44 : vector<1x128xf32> to vector<128xf32>
    %46 = vector.shape_cast %45 : vector<128xf32> to vector<1x128xf32>
    %47 = vector.broadcast %46 : vector<1x128xf32> to vector<8x128xf32>
    %48 = arith.addf %43, %47 : vector<8x128xf32>
    %49 = vector.extract_strided_slice %42 {offsets = [0, 128], sizes = [8, 128], strides = [1, 1]} : vector<8x256xf32> to vector<8x128xf32>
    %50 = arith.negf %49 : vector<8x128xf32>
    %51 = math.exp %50 : vector<8x128xf32>
    %cst_18 = arith.constant 1.000000e+00 : f32
    %52 = vector.broadcast %cst_18 : f32 to vector<8x128xf32>
    %53 = arith.addf %52, %51 : vector<8x128xf32>
    %54 = arith.divf %52, %53 : vector<8x128xf32>
    %55 = arith.mulf %0, %48 : vector<8x128xf32>
    %56 = arith.mulf %55, %54 : vector<8x128xf32>
    %57 = arith.addf %56, %38 : vector<8x128xf32>
    %c0_19 = arith.constant 0 : index
    %c0_20 = arith.constant 0 : index
    %58 = vector.load %arg4[%c0_19, %c0_20] : memref<8x128xf32, #tpu.memory_space<vmem>>, vector<8x128xf32>
    tpu.vector_store %arg4[%c0_19, %c0_20], %57 {strides = array<i32>} : memref<8x128xf32, #tpu.memory_space<vmem>>, vector<8x128xf32>,
    return
  }
  func.func @transform_0(%arg0: i32) -> (i32, i32) {
    %c0_i32 = arith.constant 0 : i32
    %c0_i32_0 = arith.constant 0 : i32
    return %arg0, %c0_i32 : i32, i32
  }
  func.func @transform_1(%arg0: i32) -> (i32, i32, i32) {
    %c0_i32 = arith.constant 0 : i32
    %c0_i32_0 = arith.constant 0 : i32
    %c0_i32_1 = arith.constant 0 : i32
    %c0_i32_2 = arith.constant 0 : i32
    return %c0_i32, %c0_i32_0, %c0_i32_1 : i32, i32, i32
  }
  func.func @transform_2(%arg0: i32) -> (i32, i32) {
    %c0_i32 = arith.constant 0 : i32
    %c0_i32_0 = arith.constant 0 : i32
    %c0_i32_1 = arith.constant 0 : i32
    return %c0_i32, %c0_i32_0 : i32, i32
  }
  func.func @transform_3(%arg0: i32) -> (i32, i32) {
    %c0_i32 = arith.constant 0 : i32
    %c0_i32_0 = arith.constant 0 : i32
    return %arg0, %c0_i32 : i32, i32
  }
}

</mosaic_0001>

<llo_original>
// kernel: tpu_custom_call.1
$region0: #{tpu_custom_call.1}
  #allocation0 [shape = 'u32[]', space=smem, size = 0x4, offset = 0x4, fixed_abs, tag = 'smem constant byte address 0x4 - core index']
  #allocation1 [shape = 'u32[144,128]{1,0:T(1,128)}', space=vmem, size = 0x12000, scoped, tag = 'internal scratch']
  %s0 = inlined_call_operand.hbm [shape: f32[16,128], index: 0, kind: input, shape index: {}]
  %s1 = inlined_call_operand.hbm [shape: bf16[3,128,256], index: 1, kind: input, shape index: {}]
  %s2 = inlined_call_operand.hbm [shape: f32[3,128], index: 2, kind: input, shape index: {}]
  %s3 = inlined_call_operand.hbm [shape: f32[16,128], index: 3, kind: output, shape index: {}]
  %s4 = sld [smem:[#allocation0]]
  $region57: #{tpu_custom_call.1} parent=0
    _
  %s6 = ssub.s32 1, %s4
  %s7 = scalar_select 0, %s6, %s4
  $region1: #{tpu_custom_call.1} parent=0
    #allocation2 [shape = 'u8[8192]{0}', space=vmem, size = 0x2000, scoped, tag = 'input window, operand 0']
    #allocation3 [shape = 's32[2]{0}', space=sflag, size = 0x8, scoped, tag = 'scoped memory for tpu_custom_call.1']
    #allocation4 [shape = 's32[2]{0}', space=sflag, size = 0x8, scoped, tag = 'scoped memory for tpu_custom_call.1']
    #allocation5 [shape = 'u8[196608]{0}', space=vmem, size = 0x30000, scoped, tag = 'input window, operand 1, single buffered']
    #allocation6 [shape = 's32[1]{0}', space=sflag, size = 0x4, scoped, tag = 'scoped memory for tpu_custom_call.1']
    #allocation7 [shape = 'u8[2048]{0}', space=vmem, size = 0x800, scoped, tag = 'input window, operand 2, single buffered']
    #allocation8 [shape = 'u8[8192]{0}', space=vmem, size = 0x2000, scoped, tag = 'output window, operand 0']
    %8 = vsyncpa [#allocation3], 0
    %s9 = scalar_lea.sflag [#allocation3], 1
    %10 = vsyncpa %s9, 0
    %11 = vsyncpa [#allocation6], 0
    %12 = vsyncpa [#allocation4], 0
    %s13 = scalar_lea.sflag [#allocation4], 1
    %14 = vsyncpa %s13, 0
    loop: start=0, step=1, limit=4
    $region2: #{tpu_custom_call.1} parent=1 // loop_pre_header
      _
    $region3: #{tpu_custom_call.1} parent=1 // loop_header
      %s16 = sphi 0, %s20
      %p17 = scmp.ge.s32.totalorder %s16, 4
      %s26 = sphi 0, %s28
      %s29 = sphi 0, %s26
      %s30 = sphi 0, %s29
      %s46 = sphi 0, %s30
      %s50 = sphi 0, %s50
      %s52 = sphi 0, %s50
      %s53 = sphi 0, %s52
      %s67 = sphi 0, %s53
      %s71 = sphi 0, %s71
      %s73 = sphi 0, %s71
      %s74 = sphi 0, %s73
      %s88 = sphi 0, %s74
      %s94 = sphi 0, %s96
      %s97 = sphi 0, %s94
      %s98 = sphi 0, %s97
      %s114 = sphi 0, %s98
    $region4: #{tpu_custom_call.1} parent=1 // loop_header_branch
      %19 = sbr.rel (%p17) target = $region8
    $region5: #{tpu_custom_call.1} parent=1 // loop_body
      %s21 = ssub.s32 %s16, 1
      %s22 = ssub.s32 %s16, 2
      %s23 = sadd.s32 %s16, 1
      %s24 = ssub.s32 %s16, %s23
      %p25 = scmp.eq.s32.totalorder %s24, 0
      %s27 = sadd.s32 %s26, 1
      %s28 = scalar_select %p25, %s26, %s27
      %p31 = pneg %p25
      %p32 = scmp.eq.s32.totalorder %s16, 1
      %p33 = por %p31, %p32
      %p34 = scmp.ne.s32.totalorder %s26, %s29
      %p35 = scmp.eq.s32.totalorder %s16, 0
      %p36 = por %p34, %p35
      %p37 = scmp.ne.s32.totalorder %s26, %s29
      %p38 = scmp.eq.s32.totalorder %s21, 1
      %p39 = por %p37, %p38
      %p40 = scmp.ne.s32.totalorder %s29, %s30
      %p41 = scmp.eq.s32.totalorder %s21, 0
      %p42 = por %p40, %p41
      %p43 = scmp.ne.s32.totalorder %s29, %s30
      %p44 = scmp.eq.s32.totalorder %s22, 1
      %p45 = por %p43, %p44
      %p47 = scmp.ne.s32.totalorder %s30, %s46
      %p48 = scmp.eq.s32.totalorder %s22, 0
      %p49 = por %p47, %p48
      %s51 = sadd.s32 %s50, 1
      %p54 = scmp.eq.s32.totalorder %s16, 1
      %p55 = scmp.ne.s32.totalorder %s50, %s52
      %p56 = scmp.eq.s32.totalorder %s16, 0
      %p57 = por %p55, %p56
      %p58 = scmp.ne.s32.totalorder %s50, %s52
      %p59 = scmp.eq.s32.totalorder %s21, 1
      %p60 = por %p58, %p59
      %p61 = scmp.ne.s32.totalorder %s52, %s53
      %p62 = scmp.eq.s32.totalorder %s21, 0
      %p63 = por %p61, %p62
      %p64 = scmp.ne.s32.totalorder %s52, %s53
      %p65 = scmp.eq.s32.totalorder %s22, 1
      %p66 = por %p64, %p65
      %p68 = scmp.ne.s32.totalorder %s53, %s67
      %p69 = scmp.eq.s32.totalorder %s22, 0
      %p70 = por %p68, %p69
      %s72 = sadd.s32 %s71, 1
      %p75 = scmp.eq.s32.totalorder %s16, 1
      %p76 = scmp.ne.s32.totalorder %s71, %s73
      %p77 = scmp.eq.s32.totalorder %s16, 0
      %p78 = por %p76, %p77
      %p79 = scmp.ne.s32.totalorder %s71, %s73
      %p80 = scmp.eq.s32.totalorder %s21, 1
      %p81 = por %p79, %p80
      %p82 = scmp.ne.s32.totalorder %s73, %s74
      %p83 = scmp.eq.s32.totalorder %s21, 0
      %p84 = por %p82, %p83
      %p85 = scmp.ne.s32.totalorder %s73, %s74
      %p86 = scmp.eq.s32.totalorder %s22, 1
      %p87 = por %p85, %p86
      %p89 = scmp.ne.s32.totalorder %s74, %s88
      %p90 = scmp.eq.s32.totalorder %s22, 0
      %p91 = por %p89, %p90
      %s92 = ssub.s32 %s16, %s23
      %p93 = scmp.eq.s32.totalorder %s92, 0
      %s95 = sadd.s32 %s94, 1
      %s96 = scalar_select %p93, %s94, %s95
      %p99 = pneg %p93
      %p100 = scmp.eq.s32.totalorder %s16, 1
      %p101 = por %p99, %p100
      %p102 = scmp.ne.s32.totalorder %s94, %s97
      %p103 = scmp.eq.s32.totalorder %s16, 0
      %p104 = por %p102, %p103
      %p105 = scmp.ne.s32.totalorder %s94, %s97
      %p106 = scmp.eq.s32.totalorder %s21, 1
      %p107 = por %p105, %p106
      %p108 = scmp.ne.s32.totalorder %s97, %s98
      %p109 = scmp.eq.s32.totalorder %s21, 0
      %p110 = por %p108, %p109
      %p111 = scmp.ne.s32.totalorder %s97, %s98
      %p112 = scmp.eq.s32.totalorder %s22, 1
      %p113 = por %p111, %p112
      %p115 = scmp.ne.s32.totalorder %s98, %s114
      %p116 = scmp.eq.s32.totalorder %s22, 0
      %p117 = por %p115, %p116
      %p118 = scmp.le.s32.totalorder 1, %s16
      %p119 = scmp.lt.s32.totalorder %s16, 3
      %p120 = pnand %p118, %p119
      %p121 = pneg %p120
      // Predicated region
      $region9: #{tpu_custom_call.1} parent=5 // pred_check
        _
      $region10: #{tpu_custom_call.1} parent=5 // pred_check_branch
        %123 = sbr.rel (%p120) target = $region12
      $region11: #{tpu_custom_call.1} parent=5 // pred_region
        %s124 = ssub.s32 %s16, 1
        // Predicated region
        $region13: #{tpu_custom_call.1} parent=11 // pred_check
          %p125 = pneg %p63
        $region14: #{tpu_custom_call.1} parent=11 // pred_check_branch
          %127 = sbr.rel (%p125) target = $region16
        $region15: #{tpu_custom_call.1} parent=11 // pred_region
          %s129 = ssub.s32 6144, 6144
          %130 = vsyncadd [#allocation6], %s129
          %s131 = sshll.u32 [#allocation5], 4
          %s132 = int_to_ptr.vmem [resolvable:$true] %s131
          %137 = dma.hbm_to_vmem [thread:$0]  %s1, 6144, %s132, [#allocation6], 128, 128, 8
        $region16: #{tpu_custom_call.1} parent=11 // pred_fallthru
          _
        // Predicated region
        $region17: #{tpu_custom_call.1} parent=11 // pred_check
          %p138 = pneg %p84
        $region18: #{tpu_custom_call.1} parent=11 // pred_check_branch
          %140 = sbr.rel (%p138) target = $region20
        $region19: #{tpu_custom_call.1} parent=11 // pred_region
          %s142 = ssub.s32 64, 64
          %143 = vsyncadd [#allocation6], %s142
          %s145 = sshll.u32 [#allocation7], 4
          %s146 = int_to_ptr.vmem [resolvable:$true] %s145
          %148 = dma.hbm_to_vmem [thread:$0]  %s2, 64, %s146, [#allocation6]
        $region20: #{tpu_custom_call.1} parent=11 // pred_fallthru
          _
      $region12: #{tpu_custom_call.1} parent=5 // pred_fallthru
        _
      %p149 = scmp.lt.s32.totalorder %s16, 2
      // Predicated region
      $region21: #{tpu_custom_call.1} parent=5 // pred_check
        %p150 = pneg %p149
      $region22: #{tpu_custom_call.1} parent=5 // pred_check_branch
        %152 = sbr.rel (%p150) target = $region24
      $region23: #{tpu_custom_call.1} parent=5 // pred_region
        // Predicated region
        $region25: #{tpu_custom_call.1} parent=23 // pred_check
          %p153 = pneg %p36
        $region26: #{tpu_custom_call.1} parent=23 // pred_check_branch
          %155 = sbr.rel (%p153) target = $region28
        $region27: #{tpu_custom_call.1} parent=23 // pred_region
          %s156 = sand.u32 %s26, 1
          %s157 = scalar_lea.sflag [#allocation3], %s156
          %s158 = sand.u32 %s26, 1
          %s159 = smul.addr %s158, 8
          %s160 = scalar_lea.vmem [#allocation2], %s159
          %s162 = ssub.s32 128, 128
          %163 = vsyncadd %s157, %s162
          %s164 = smul.addr %s16, 128
          %s165 = scalar_lea.hbm %s0, %s164
          %s167 = sshll.u32 %s160, 4
          %s168 = int_to_ptr.vmem [resolvable:$true] %s167
          %170 = dma.hbm_to_vmem [thread:$0]  %s165, 128, %s168, %s157
        $region28: #{tpu_custom_call.1} parent=23 // pred_fallthru
          _
      $region24: #{tpu_custom_call.1} parent=5 // pred_fallthru
        _
      %p171 = scmp.le.s32.totalorder 1, %s16
      %p172 = scmp.lt.s32.totalorder %s16, 3
      %p173 = pnand %p171, %p172
      %p174 = pneg %p173
      // Predicated region
      $region29: #{tpu_custom_call.1} parent=5 // pred_check
        _
      $region30: #{tpu_custom_call.1} parent=5 // pred_check_branch
        %176 = sbr.rel (%p173) target = $region32
      $region31: #{tpu_custom_call.1} parent=5 // pred_region
        %s177 = ssub.s32 %s16, 1
        %s178 = sand.u32 %s29, 1
        %s179 = scalar_lea.sflag [#allocation3], %s178
        %s180 = sand.u32 %s29, 1
        %s181 = smul.addr %s180, 8
        %s182 = scalar_lea.vmem [#allocation2], %s181
        // Predicated region
        $region33: #{tpu_custom_call.1} parent=31 // pred_check
          %p183 = pneg %p42
        $region34: #{tpu_custom_call.1} parent=31 // pred_check_branch
          %185 = sbr.rel (%p183) target = $region36
        $region35: #{tpu_custom_call.1} parent=31 // pred_region
          %186 = dma.done %s179, 128
        $region36: #{tpu_custom_call.1} parent=31 // pred_fallthru
          _
        // Predicated region
        $region37: #{tpu_custom_call.1} parent=31 // pred_check
          %p187 = pneg %p63
        $region38: #{tpu_custom_call.1} parent=31 // pred_check_branch
          %189 = sbr.rel (%p187) target = $region40
        $region39: #{tpu_custom_call.1} parent=31 // pred_region
          %190 = dma.done [#allocation6], 6144
        $region40: #{tpu_custom_call.1} parent=31 // pred_fallthru
          _
        // Predicated region
        $region41: #{tpu_custom_call.1} parent=31 // pred_check
          %p191 = pneg %p84
        $region42: #{tpu_custom_call.1} parent=31 // pred_check_branch
          %193 = sbr.rel (%p191) target = $region44
        $region43: #{tpu_custom_call.1} parent=31 // pred_region
          %194 = dma.done [#allocation6], 64
        $region44: #{tpu_custom_call.1} parent=31 // pred_fallthru
          _
        %s195 = sand.u32 %s29, 1
        %s196 = scalar_lea.sflag [#allocation3], %s195
        %s197 = sand.u32 %s29, 1
        %s198 = smul.addr %s197, 8
        %s199 = scalar_lea.vmem [#allocation2], %s198
        %p200 = pneg %p42
        %p201 = pneg %p39
        %p202 = pneg %p63
        %p203 = pneg %p60
        %p204 = pneg %p84
        %p205 = pneg %p81
        %p206 = pneg %p110
        %p207 = pneg %p107
        %s208 = sand.u32 %s97, 1
        %s209 = scalar_lea.sflag [#allocation4], %s208
        %s210 = sand.u32 %s97, 1
        %s211 = smul.addr %s210, 8
        %s212 = scalar_lea.vmem [#allocation8], %s211
        %v214 = vld [vmem:[%s182] sm:$0xff]
        %v215 = vpack.c.bf16 %v214, %v214
        %v216 = vld [vmem:[#allocation5] sm:$0xff]
        %v217 = vld [vmem:[#allocation5 + $0x8] sm:$0xff]
        %v218 = vld [vmem:[#allocation5 + $0x10] sm:$0xff]
        %v219 = vld [vmem:[#allocation5 + $0x18] sm:$0xff]
        %v220 = vld [vmem:[#allocation5 + $0x20] sm:$0xff]
        %v221 = vld [vmem:[#allocation5 + $0x28] sm:$0xff]
        %v222 = vld [vmem:[#allocation5 + $0x30] sm:$0xff]
        %v223 = vld [vmem:[#allocation5 + $0x38] sm:$0xff]
        %v224 = vld [vmem:[#allocation5 + $0x40] sm:$0xff]
        %v225 = vld [vmem:[#allocation5 + $0x48] sm:$0xff]
        %v226 = vld [vmem:[#allocation5 + $0x50] sm:$0xff]
        %v227 = vld [vmem:[#allocation5 + $0x58] sm:$0xff]
        %v228 = vld [vmem:[#allocation5 + $0x60] sm:$0xff]
        %v229 = vld [vmem:[#allocation5 + $0x68] sm:$0xff]
        %v230 = vld [vmem:[#allocation5 + $0x70] sm:$0xff]
        %v231 = vld [vmem:[#allocation5 + $0x78] sm:$0xff]
        %v248 = vunpack.c.l.b16 %v216
        %v249 = vunpack.c.h.b16 %v216
        %v250 = vunpack.c.l.b16 %v217
        %v251 = vunpack.c.h.b16 %v217
        %v252 = vunpack.c.l.b16 %v218
        %v253 = vunpack.c.h.b16 %v218
        %v254 = vunpack.c.l.b16 %v219
        %v255 = vunpack.c.h.b16 %v219
        %v256 = vunpack.c.l.b16 %v220
        %v257 = vunpack.c.h.b16 %v220
        %v258 = vunpack.c.l.b16 %v221
        %v259 = vunpack.c.h.b16 %v221
        %v260 = vunpack.c.l.b16 %v222
        %v261 = vunpack.c.h.b16 %v222
        %v262 = vunpack.c.l.b16 %v223
        %v263 = vunpack.c.h.b16 %v223
        %v264 = vunpack.c.l.b16 %v224
        %v265 = vunpack.c.h.b16 %v224
        %v266 = vunpack.c.l.b16 %v225
        %v267 = vunpack.c.h.b16 %v225
        %v268 = vunpack.c.l.b16 %v226
        %v269 = vunpack.c.h.b16 %v226
        %v270 = vunpack.c.l.b16 %v227
        %v271 = vunpack.c.h.b16 %v227
        %v272 = vunpack.c.l.b16 %v228
        %v273 = vunpack.c.h.b16 %v228
        %v274 = vunpack.c.l.b16 %v229
        %v275 = vunpack.c.h.b16 %v229
        %v276 = vunpack.c.l.b16 %v230
        %v277 = vunpack.c.h.b16 %v230
        %v278 = vunpack.c.l.b16 %v231
        %v279 = vunpack.c.h.b16 %v231
        %v280 = vpack.c.b16 %v250, %v248
        %v281 = vpack.c.b16 %v251, %v249
        %v282 = vpack.c.b16 %v254, %v252
        %v283 = vpack.c.b16 %v255, %v253
        %v284 = vpack.c.b16 %v258, %v256
        %v285 = vpack.c.b16 %v259, %v257
        %v286 = vpack.c.b16 %v262, %v260
        %v287 = vpack.c.b16 %v263, %v261
        %v288 = vpack.c.b16 %v266, %v264
        %v289 = vpack.c.b16 %v267, %v265
        %v290 = vpack.c.b16 %v270, %v268
        %v291 = vpack.c.b16 %v271, %v269
        %v292 = vpack.c.b16 %v274, %v272
        %v293 = vpack.c.b16 %v275, %v273
        %v294 = vpack.c.b16 %v278, %v276
        %v295 = vpack.c.b16 %v279, %v277
        %312 = vmatprep.subr.bf16.mxu0 %v295
        %313 = vmatpush1.bf16.msra.mxu0 %v294
        %314 = vmatprep.subr.bf16.mxu0 %v293
        %315 = vmatpush1.bf16.msra.mxu0 %v292
        %316 = vmatprep.subr.bf16.mxu0 %v291
        %317 = vmatpush1.bf16.msra.mxu0 %v290
        %318 = vmatprep.subr.bf16.mxu0 %v289
        %319 = vmatpush1.bf16.msra.mxu0 %v288
        %320 = vmatprep.subr.bf16.mxu0 %v287
        %321 = vmatpush1.bf16.msra.mxu0 %v286
        %322 = vmatprep.subr.bf16.mxu0 %v285
        %323 = vmatpush1.bf16.msra.mxu0 %v284
        %324 = vmatprep.subr.bf16.mxu0 %v283
        %325 = vmatpush1.bf16.msra.mxu0 %v282
        %326 = vmatprep.subr.bf16.mxu0 %v281
        %327 = vmatpush1.bf16.msra.mxu0 %v280
        %328 = vmatprep.subr.bf16.mxu0 0
        %329 = vmatpush2.bf16.msra.mxu0 0
        %330 = vmatprep.subr.bf16.mxu0 0
        %331 = vmatpush2.bf16.msra.mxu0 0
        %332 = vmatprep.subr.bf16.mxu0 0
        %333 = vmatpush2.bf16.msra.mxu0 0
        %334 = vmatprep.subr.bf16.mxu0 0
        %335 = vmatpush2.bf16.msra.mxu0 0
        %336 = vmatprep.subr.bf16.mxu0 0
        %337 = vmatpush2.bf16.msra.mxu0 0
        %338 = vmatprep.subr.bf16.mxu0 0
        %339 = vmatpush2.bf16.msra.mxu0 0
        %340 = vmatprep.subr.bf16.mxu0 0
        %341 = vmatpush2.bf16.msra.mxu0 0
        %342 = vmatprep.subr.bf16.mxu0 0
        %343 = vmatpush2.bf16.msra.mxu0 0
        %344 = vmatprep.mubr.bf16.mxu0 0
        %345 = vmatmul.mubr.bf16.gmra.mxu0 %v215
        %v346 = vpop.f32.mrf.mxu0
        %v347 = vadd.f32 0.0, %v346
        %v348 = vpop.f32.mrf.mxu0
        %v349 = vadd.f32 0.0, %v348
        %v350 = vpop.f32.mrf.mxu0
        %v351 = vpop.f32.mrf.mxu0
        %352 = vdwg.mxu0
        %v353 = vld [vmem:[#allocation7] sm:$0x1]
        %v354 = vlaneseq
        %v355 = vshrl.u32 %v354, 7
        %v356 = vsub.s32 0, %v355
        %v357 = vrot.slane %v353, %v356
        %v358 = vadd.f32 %v347, %v357
        %v359 = vxor.u32 %v349, 2147483648
        %v360 = vmul.f32 %v359, 1.442695
        %v361 = vpow.pop %v360
        %v362 = vadd.f32 %v361, 1.0
        %v363 = vrcp.pop %v362
        %v364 = vmul.f32 1.0, %v363
        %v365 = vmul.f32 %v214, %v358
        %v366 = vmul.f32 %v365, %v364
        %v367 = vadd.f32 %v366, %v214
        %v368 = vpack.c.bf16 %v367, %v367
        %s369 = scalar_lea.vmem [#allocation5], 128
        %v370 = vld [vmem:[%s369] sm:$0xff]
        %v371 = vld [vmem:[%s369 + $0x8] sm:$0xff]
        %v372 = vld [vmem:[%s369 + $0x10] sm:$0xff]
        %v373 = vld [vmem:[%s369 + $0x18] sm:$0xff]
        %v374 = vld [vmem:[%s369 + $0x20] sm:$0xff]
        %v375 = vld [vmem:[%s369 + $0x28] sm:$0xff]
        %v376 = vld [vmem:[%s369 + $0x30] sm:$0xff]
        %v377 = vld [vmem:[%s369 + $0x38] sm:$0xff]
        %v378 = vld [vmem:[%s369 + $0x40] sm:$0xff]
        %v379 = vld [vmem:[%s369 + $0x48] sm:$0xff]
        %v380 = vld [vmem:[%s369 + $0x50] sm:$0xff]
        %v381 = vld [vmem:[%s369 + $0x58] sm:$0xff]
        %v382 = vld [vmem:[%s369 + $0x60] sm:$0xff]
        %v383 = vld [vmem:[%s369 + $0x68] sm:$0xff]
        %v384 = vld [vmem:[%s369 + $0x70] sm:$0xff]
        %v385 = vld [vmem:[%s369 + $0x78] sm:$0xff]
        %v402 = vunpack.c.l.b16 %v370
        %v403 = vunpack.c.h.b16 %v370
        %v404 = vunpack.c.l.b16 %v371
        %v405 = vunpack.c.h.b16 %v371
        %v406 = vunpack.c.l.b16 %v372
        %v407 = vunpack.c.h.b16 %v372
        %v408 = vunpack.c.l.b16 %v373
        %v409 = vunpack.c.h.b16 %v373
        %v410 = vunpack.c.l.b16 %v374
        %v411 = vunpack.c.h.b16 %v374
        %v412 = vunpack.c.l.b16 %v375
        %v413 = vunpack.c.h.b16 %v375
        %v414 = vunpack.c.l.b16 %v376
        %v415 = vunpack.c.h.b16 %v376
        %v416 = vunpack.c.l.b16 %v377
        %v417 = vunpack.c.h.b16 %v377
        %v418 = vunpack.c.l.b16 %v378
        %v419 = vunpack.c.h.b16 %v378
        %v420 = vunpack.c.l.b16 %v379
        %v421 = vunpack.c.h.b16 %v379
        %v422 = vunpack.c.l.b16 %v380
        %v423 = vunpack.c.h.b16 %v380
        %v424 = vunpack.c.l.b16 %v381
        %v425 = vunpack.c.h.b16 %v381
        %v426 = vunpack.c.l.b16 %v382
        %v427 = vunpack.c.h.b16 %v382
        %v428 = vunpack.c.l.b16 %v383
        %v429 = vunpack.c.h.b16 %v383
        %v430 = vunpack.c.l.b16 %v384
        %v431 = vunpack.c.h.b16 %v384
        %v432 = vunpack.c.l.b16 %v385
        %v433 = vunpack.c.h.b16 %v385
        %v434 = vpack.c.b16 %v404, %v402
        %v435 = vpack.c.b16 %v405, %v403
        %v436 = vpack.c.b16 %v408, %v406
        %v437 = vpack.c.b16 %v409, %v407
        %v438 = vpack.c.b16 %v412, %v410
        %v439 = vpack.c.b16 %v413, %v411
        %v440 = vpack.c.b16 %v416, %v414
        %v441 = vpack.c.b16 %v417, %v415
        %v442 = vpack.c.b16 %v420, %v418
        %v443 = vpack.c.b16 %v421, %v419
        %v444 = vpack.c.b16 %v424, %v422
        %v445 = vpack.c.b16 %v425, %v423
        %v446 = vpack.c.b16 %v428, %v426
        %v447 = vpack.c.b16 %v429, %v427
        %v448 = vpack.c.b16 %v432, %v430
        %v449 = vpack.c.b16 %v433, %v431
        %466 = vmatprep.subr.bf16.mxu0 %v449
        %467 = vmatpush1.bf16.msra.mxu0 %v448
        %468 = vmatprep.subr.bf16.mxu0 %v447
        %469 = vmatpush1.bf16.msra.mxu0 %v446
        %470 = vmatprep.subr.bf16.mxu0 %v445
        %471 = vmatpush1.bf16.msra.mxu0 %v444
        %472 = vmatprep.subr.bf16.mxu0 %v443
        %473 = vmatpush1.bf16.msra.mxu0 %v442
        %474 = vmatprep.subr.bf16.mxu0 %v441
        %475 = vmatpush1.bf16.msra.mxu0 %v440
        %476 = vmatprep.subr.bf16.mxu0 %v439
        %477 = vmatpush1.bf16.msra.mxu0 %v438
        %478 = vmatprep.subr.bf16.mxu0 %v437
        %479 = vmatpush1.bf16.msra.mxu0 %v436
        %480 = vmatprep.subr.bf16.mxu0 %v435
        %481 = vmatpush1.bf16.msra.mxu0 %v434
        %482 = vmatprep.subr.bf16.mxu0 0
        %483 = vmatpush2.bf16.msra.mxu0 0
        %484 = vmatprep.subr.bf16.mxu0 0
        %485 = vmatpush2.bf16.msra.mxu0 0
        %486 = vmatprep.subr.bf16.mxu0 0
        %487 = vmatpush2.bf16.msra.mxu0 0
        %488 = vmatprep.subr.bf16.mxu0 0
        %489 = vmatpush2.bf16.msra.mxu0 0
        %490 = vmatprep.subr.bf16.mxu0 0
        %491 = vmatpush2.bf16.msra.mxu0 0
        %492 = vmatprep.subr.bf16.mxu0 0
        %493 = vmatpush2.bf16.msra.mxu0 0
        %494 = vmatprep.subr.bf16.mxu0 0
        %495 = vmatpush2.bf16.msra.mxu0 0
        %496 = vmatprep.subr.bf16.mxu0 0
        %497 = vmatpush2.bf16.msra.mxu0 0
        %498 = vmatprep.mubr.bf16.mxu0 0
        %499 = vmatmul.mubr.bf16.gmra.mxu0 %v368
        %v500 = vpop.f32.mrf.mxu0
        %v501 = vadd.f32 0.0, %v500
        %v502 = vpop.f32.mrf.mxu0
        %v503 = vadd.f32 0.0, %v502
        %v504 = vpop.f32.mrf.mxu0
        %v505 = vpop.f32.mrf.mxu0
        %506 = vdwg.mxu0
        %v507 = vld [vmem:[#allocation7 + $0x1] sm:$0x1]
        %v508 = vlaneseq
        %v509 = vshrl.u32 %v508, 7
        %v510 = vsub.s32 0, %v509
        %v511 = vrot.slane %v507, %v510
        %v512 = vadd.f32 %v501, %v511
        %v513 = vxor.u32 %v503, 2147483648
        %v514 = vmul.f32 %v513, 1.442695
        %v515 = vpow.pop %v514
        %v516 = vadd.f32 %v515, 1.0
        %v517 = vrcp.pop %v516
        %v518 = vmul.f32 1.0, %v517
        %v519 = vmul.f32 %v214, %v512
        %v520 = vmul.f32 %v519, %v518
        %v521 = vadd.f32 %v520, %v367
        %v522 = vpack.c.bf16 %v521, %v521
        %s523 = scalar_lea.vmem [#allocation5], 256
        %v524 = vld [vmem:[%s523] sm:$0xff]
        %v525 = vld [vmem:[%s523 + $0x8] sm:$0xff]
        %v526 = vld [vmem:[%s523 + $0x10] sm:$0xff]
        %v527 = vld [vmem:[%s523 + $0x18] sm:$0xff]
        %v528 = vld [vmem:[%s523 + $0x20] sm:$0xff]
        %v529 = vld [vmem:[%s523 + $0x28] sm:$0xff]
        %v530 = vld [vmem:[%s523 + $0x30] sm:$0xff]
        %v531 = vld [vmem:[%s523 + $0x38] sm:$0xff]
        %v532 = vld [vmem:[%s523 + $0x40] sm:$0xff]
        %v533 = vld [vmem:[%s523 + $0x48] sm:$0xff]
        %v534 = vld [vmem:[%s523 + $0x50] sm:$0xff]
        %v535 = vld [vmem:[%s523 + $0x58] sm:$0xff]
        %v536 = vld [vmem:[%s523 + $0x60] sm:$0xff]
        %v537 = vld [vmem:[%s523 + $0x68] sm:$0xff]
        %v538 = vld [vmem:[%s523 + $0x70] sm:$0xff]
        %v539 = vld [vmem:[%s523 + $0x78] sm:$0xff]
        %v556 = vunpack.c.l.b16 %v524
        %v557 = vunpack.c.h.b16 %v524
        %v558 = vunpack.c.l.b16 %v525
        %v559 = vunpack.c.h.b16 %v525
        %v560 = vunpack.c.l.b16 %v526
        %v561 = vunpack.c.h.b16 %v526
        %v562 = vunpack.c.l.b16 %v527
        %v563 = vunpack.c.h.b16 %v527
        %v564 = vunpack.c.l.b16 %v528
        %v565 = vunpack.c.h.b16 %v528
        %v566 = vunpack.c.l.b16 %v529
        %v567 = vunpack.c.h.b16 %v529
        %v568 = vunpack.c.l.b16 %v530
        %v569 = vunpack.c.h.b16 %v530
        %v570 = vunpack.c.l.b16 %v531
        %v571 = vunpack.c.h.b16 %v531
        %v572 = vunpack.c.l.b16 %v532
        %v573 = vunpack.c.h.b16 %v532
        %v574 = vunpack.c.l.b16 %v533
        %v575 = vunpack.c.h.b16 %v533
        %v576 = vunpack.c.l.b16 %v534
        %v577 = vunpack.c.h.b16 %v534
        %v578 = vunpack.c.l.b16 %v535
        %v579 = vunpack.c.h.b16 %v535
        %v580 = vunpack.c.l.b16 %v536
        %v581 = vunpack.c.h.b16 %v536
        %v582 = vunpack.c.l.b16 %v537
        %v583 = vunpack.c.h.b16 %v537
        %v584 = vunpack.c.l.b16 %v538
        %v585 = vunpack.c.h.b16 %v538
        %v586 = vunpack.c.l.b16 %v539
        %v587 = vunpack.c.h.b16 %v539
        %v588 = vpack.c.b16 %v558, %v556
        %v589 = vpack.c.b16 %v559, %v557
        %v590 = vpack.c.b16 %v562, %v560
        %v591 = vpack.c.b16 %v563, %v561
        %v592 = vpack.c.b16 %v566, %v564
        %v593 = vpack.c.b16 %v567, %v565
        %v594 = vpack.c.b16 %v570, %v568
        %v595 = vpack.c.b16 %v571, %v569
        %v596 = vpack.c.b16 %v574, %v572
        %v597 = vpack.c.b16 %v575, %v573
        %v598 = vpack.c.b16 %v578, %v576
        %v599 = vpack.c.b16 %v579, %v577
        %v600 = vpack.c.b16 %v582, %v580
        %v601 = vpack.c.b16 %v583, %v581
        %v602 = vpack.c.b16 %v586, %v584
        %v603 = vpack.c.b16 %v587, %v585
        %620 = vmatprep.subr.bf16.mxu0 %v603
        %621 = vmatpush1.bf16.msra.mxu0 %v602
        %622 = vmatprep.subr.bf16.mxu0 %v601
        %623 = vmatpush1.bf16.msra.mxu0 %v600
        %624 = vmatprep.subr.bf16.mxu0 %v599
        %625 = vmatpush1.bf16.msra.mxu0 %v598
        %626 = vmatprep.subr.bf16.mxu0 %v597
        %627 = vmatpush1.bf16.msra.mxu0 %v596
        %628 = vmatprep.subr.bf16.mxu0 %v595
        %629 = vmatpush1.bf16.msra.mxu0 %v594
        %630 = vmatprep.subr.bf16.mxu0 %v593
        %631 = vmatpush1.bf16.msra.mxu0 %v592
        %632 = vmatprep.subr.bf16.mxu0 %v591
        %633 = vmatpush1.bf16.msra.mxu0 %v590
        %634 = vmatprep.subr.bf16.mxu0 %v589
        %635 = vmatpush1.bf16.msra.mxu0 %v588
        %636 = vmatprep.subr.bf16.mxu0 0
        %637 = vmatpush2.bf16.msra.mxu0 0
        %638 = vmatprep.subr.bf16.mxu0 0
        %639 = vmatpush2.bf16.msra.mxu0 0
        %640 = vmatprep.subr.bf16.mxu0 0
        %641 = vmatpush2.bf16.msra.mxu0 0
        %642 = vmatprep.subr.bf16.mxu0 0
        %643 = vmatpush2.bf16.msra.mxu0 0
        %644 = vmatprep.subr.bf16.mxu0 0
        %645 = vmatpush2.bf16.msra.mxu0 0
        %646 = vmatprep.subr.bf16.mxu0 0
        %647 = vmatpush2.bf16.msra.mxu0 0
        %648 = vmatprep.subr.bf16.mxu0 0
        %649 = vmatpush2.bf16.msra.mxu0 0
        %650 = vmatprep.subr.bf16.mxu0 0
        %651 = vmatpush2.bf16.msra.mxu0 0
        %652 = vmatprep.mubr.bf16.mxu0 0
        %653 = vmatmul.mubr.bf16.gmra.mxu0 %v522
        %v654 = vpop.f32.mrf.mxu0
        %v655 = vadd.f32 0.0, %v654
        %v656 = vpop.f32.mrf.mxu0
        %v657 = vadd.f32 0.0, %v656
        %v658 = vpop.f32.mrf.mxu0
        %v659 = vpop.f32.mrf.mxu0
        %660 = vdwg.mxu0
        %v661 = vld [vmem:[#allocation7 + $0x2] sm:$0x1]
        %v662 = vlaneseq
        %v663 = vshrl.u32 %v662, 7
        %v664 = vsub.s32 0, %v663
        %v665 = vrot.slane %v661, %v664
        %v666 = vadd.f32 %v655, %v665
        %v667 = vxor.u32 %v657, 2147483648
        %v668 = vmul.f32 %v667, 1.442695
        %v669 = vpow.pop %v668
        %v670 = vadd.f32 %v669, 1.0
        %v671 = vrcp.pop %v670
        %v672 = vmul.f32 1.0, %v671
        %v673 = vmul.f32 %v214, %v666
        %v674 = vmul.f32 %v673, %v672
        %v675 = vadd.f32 %v674, %v521
        %676 = vst [vmem:[%s212] sm:$0xff] %v675
        %s677 = sand.u32 %s97, 1
        %s678 = scalar_lea.sflag [#allocation4], %s677
        %s679 = sand.u32 %s97, 1
        %s680 = smul.addr %s679, 8
        %s681 = scalar_lea.vmem [#allocation8], %s680
        // Predicated region
        $region45: #{tpu_custom_call.1} parent=31 // pred_check
          %p682 = pneg %p107
        $region46: #{tpu_custom_call.1} parent=31 // pred_check_branch
          %684 = sbr.rel (%p682) target = $region48
        $region47: #{tpu_custom_call.1} parent=31 // pred_region
          %s686 = ssub.s32 128, 128
          %687 = vsyncadd %s678, %s686
          %s688 = smul.addr %s21, 128
          %s689 = scalar_lea.hbm %s3, %s688
          %s691 = sshll.u32 %s681, 4
          %s692 = int_to_ptr.vmem [resolvable:$true] %s691
          %694 = dma.vmem_to_hbm [thread:$0]  %s692, 128, %s689, %s678
        $region48: #{tpu_custom_call.1} parent=31 // pred_fallthru
          _
      $region32: #{tpu_custom_call.1} parent=5 // pred_fallthru
        _
      %p695 = scmp.le.s32.totalorder 2, %s16
      // Predicated region
      $region49: #{tpu_custom_call.1} parent=5 // pred_check
        %p696 = pneg %p695
      $region50: #{tpu_custom_call.1} parent=5 // pred_check_branch
        %698 = sbr.rel (%p696) target = $region52
      $region51: #{tpu_custom_call.1} parent=5 // pred_region
        %s699 = ssub.s32 %s16, 2
        // Predicated region
        $region53: #{tpu_custom_call.1} parent=51 // pred_check
          %p700 = pneg %p113
        $region54: #{tpu_custom_call.1} parent=51 // pred_check_branch
          %702 = sbr.rel (%p700) target = $region56
        $region55: #{tpu_custom_call.1} parent=51 // pred_region
          %s703 = sand.u32 %s98, 1
          %s704 = scalar_lea.sflag [#allocation4], %s703
          %s705 = sand.u32 %s98, 1
          %s706 = smul.addr %s705, 8
          %s707 = scalar_lea.vmem [#allocation8], %s706
          %708 = dma.done %s704, 128
        $region56: #{tpu_custom_call.1} parent=51 // pred_fallthru
          _
      $region52: #{tpu_custom_call.1} parent=5 // pred_fallthru
        _
    $region6: #{tpu_custom_call.1} parent=1 // loop_footer
      %s20 = sadd.s32 1, %s16
    $region7: #{tpu_custom_call.1} parent=1 // loop_footer_branch
      %15 = sbr.rel target = $region3
    $region8: #{tpu_custom_call.1} parent=1 // loop_exit
      _
    %709 = vsyncpa [#allocation3], 1
    %s710 = scalar_lea.sflag [#allocation3], 1
    %711 = vsyncpa %s710, 1
    %712 = vsyncpa [#allocation6], 1
    %713 = vsyncpa [#allocation4], 1
    %s714 = scalar_lea.sflag [#allocation4], 1
    %715 = vsyncpa %s714, 1

// kernel: tpu_custom_call.1
$region0: #{tpu_custom_call.1}
  #allocation0 [shape = 'u32[]', space=smem, size = 0x4, offset = 0x4, fixed_abs, tag = 'smem constant byte address 0x4 - core index']
  #allocation1 [shape = 'u32[144,128]{1,0:T(1,128)}', space=vmem, size = 0x12000, scoped, tag = 'internal scratch']
  %s0 = inlined_call_operand.hbm [shape: f32[16,128], index: 0, kind: input, shape index: {}]
  %s1 = inlined_call_operand.hbm [shape: bf16[3,128,256], index: 1, kind: input, shape index: {}]
  %s2 = inlined_call_operand.hbm [shape: f32[3,128], index: 2, kind: input, shape index: {}]
  %s3 = inlined_call_operand.hbm [shape: f32[16,128], index: 3, kind: output, shape index: {}]
  %s4 = sld [smem:[#allocation0]]
  $region57: #{tpu_custom_call.1} parent=0
    _
  %s6 = ssub.s32 1, %s4
  %s7 = scalar_select 0, %s6, %s4
  $region1: #{tpu_custom_call.1} parent=0
    #allocation2 [shape = 'u8[8192]{0}', space=vmem, size = 0x2000, scoped, tag = 'input window, operand 0']
    #allocation3 [shape = 's32[2]{0}', space=sflag, size = 0x8, scoped, tag = 'scoped memory for tpu_custom_call.1']
    #allocation4 [shape = 's32[2]{0}', space=sflag, size = 0x8, scoped, tag = 'scoped memory for tpu_custom_call.1']
    #allocation5 [shape = 'u8[196608]{0}', space=vmem, size = 0x30000, scoped, tag = 'input window, operand 1, single buffered']
    #allocation6 [shape = 's32[1]{0}', space=sflag, size = 0x4, scoped, tag = 'scoped memory for tpu_custom_call.1']
    #allocation7 [shape = 'u8[2048]{0}', space=vmem, size = 0x800, scoped, tag = 'input window, operand 2, single buffered']
    #allocation8 [shape = 'u8[8192]{0}', space=vmem, size = 0x2000, scoped, tag = 'output window, operand 0']
    %8 = vsyncpa [#allocation3], 0
    %s9 = scalar_lea.sflag [#allocation3], 1
    %10 = vsyncpa %s9, 0
    %11 = vsyncpa [#allocation6], 0
    %12 = vsyncpa [#allocation4], 0
    %s13 = scalar_lea.sflag [#allocation4], 1
    %14 = vsyncpa %s13, 0
    loop: start=0, step=1, limit=4
    $region2: #{tpu_custom_call.1} parent=1 // loop_pre_header
      _
    $region3: #{tpu_custom_call.1} parent=1 // loop_header
      %s16 = sphi 0, %s20
      %p17 = scmp.ge.s32.totalorder %s16, 4
      %s26 = sphi 0, %s28
      %s29 = sphi 0, %s26
      %s30 = sphi 0, %s29
      %s46 = sphi 0, %s30
      %s50 = sphi 0, %s50
      %s52 = sphi 0, %s50
      %s53 = sphi 0, %s52
      %s67 = sphi 0, %s53
      %s71 = sphi 0, %s71
      %s73 = sphi 0, %s71
      %s74 = sphi 0, %s73
      %s88 = sphi 0, %s74
      %s94 = sphi 0, %s96
      %s97 = sphi 0, %s94
      %s98 = sphi 0, %s97
      %s114 = sphi 0, %s98
    $region4: #{tpu_custom_call.1} parent=1 // loop_header_branch
      %19 = sbr.rel (%p17) target = $region8
    $region5: #{tpu_custom_call.1} parent=1 // loop_body
      %s21 = ssub.s32 %s16, 1
      %s22 = ssub.s32 %s16, 2
      %s23 = sadd.s32 %s16, 1
      %s24 = ssub.s32 %s16, %s23
      %p25 = scmp.eq.s32.totalorder %s24, 0
      %s27 = sadd.s32 %s26, 1
      %s28 = scalar_select %p25, %s26, %s27
      %p31 = pneg %p25
      %p32 = scmp.eq.s32.totalorder %s16, 1
      %p33 = por %p31, %p32
      %p34 = scmp.ne.s32.totalorder %s26, %s29
      %p35 = scmp.eq.s32.totalorder %s16, 0
      %p36 = por %p34, %p35
      %p37 = scmp.ne.s32.totalorder %s26, %s29
      %p38 = scmp.eq.s32.totalorder %s21, 1
      %p39 = por %p37, %p38
      %p40 = scmp.ne.s32.totalorder %s29, %s30
      %p41 = scmp.eq.s32.totalorder %s21, 0
      %p42 = por %p40, %p41
      %p43 = scmp.ne.s32.totalorder %s29, %s30
      %p44 = scmp.eq.s32.totalorder %s22, 1
      %p45 = por %p43, %p44
      %p47 = scmp.ne.s32.totalorder %s30, %s46
      %p48 = scmp.eq.s32.totalorder %s22, 0
      %p49 = por %p47, %p48
      %s51 = sadd.s32 %s50, 1
      %p54 = scmp.eq.s32.totalorder %s16, 1
      %p55 = scmp.ne.s32.totalorder %s50, %s52
      %p56 = scmp.eq.s32.totalorder %s16, 0
      %p57 = por %p55, %p56
      %p58 = scmp.ne.s32.totalorder %s50, %s52
      %p59 = scmp.eq.s32.totalorder %s21, 1
      %p60 = por %p58, %p59
      %p61 = scmp.ne.s32.totalorder %s52, %s53
      %p62 = scmp.eq.s32.totalorder %s21, 0
      %p63 = por %p61, %p62
      %p64 = scmp.ne.s32.totalorder %s52, %s53
      %p65 = scmp.eq.s32.totalorder %s22, 1
      %p66 = por %p64, %p65
      %p68 = scmp.ne.s32.totalorder %s53, %s67
      %p69 = scmp.eq.s32.totalorder %s22, 0
      %p70 = por %p68, %p69
      %s72 = sadd.s32 %s71, 1
      %p75 = scmp.eq.s32.totalorder %s16, 1
      %p76 = scmp.ne.s32.totalorder %s71, %s73
      %p77 = scmp.eq.s32.totalorder %s16, 0
      %p78 = por %p76, %p77
      %p79 = scmp.ne.s32.totalorder %s71, %s73
      %p80 = scmp.eq.s32.totalorder %s21, 1
      %p81 = por %p79, %p80
      %p82 = scmp.ne.s32.totalorder %s73, %s74
      %p83 = scmp.eq.s32.totalorder %s21, 0
      %p84 = por %p82, %p83
      %p85 = scmp.ne.s32.totalorder %s73, %s74
      %p86 = scmp.eq.s32.totalorder %s22, 1
      %p87 = por %p85, %p86
      %p89 = scmp.ne.s32.totalorder %s74, %s88
      %p90 = scmp.eq.s32.totalorder %s22, 0
      %p91 = por %p89, %p90
      %s92 = ssub.s32 %s16, %s23
      %p93 = scmp.eq.s32.totalorder %s92, 0
      %s95 = sadd.s32 %s94, 1
      %s96 = scalar_select %p93, %s94, %s95
      %p99 = pneg %p93
      %p100 = scmp.eq.s32.totalorder %s16, 1
      %p101 = por %p99, %p100
      %p102 = scmp.ne.s32.totalorder %s94, %s97
      %p103 = scmp.eq.s32.totalorder %s16, 0
      %p104 = por %p102, %p103
      %p105 = scmp.ne.s32.totalorder %s94, %s97
      %p106 = scmp.eq.s32.totalorder %s21, 1
      %p107 = por %p105, %p106
      %p108 = scmp.ne.s32.totalorder %s97, %s98
      %p109 = scmp.eq.s32.totalorder %s21, 0
      %p110 = por %p108, %p109
      %p111 = scmp.ne.s32.totalorder %s97, %s98
      %p112 = scmp.eq.s32.totalorder %s22, 1
      %p113 = por %p111, %p112
      %p115 = scmp.ne.s32.totalorder %s98, %s114
      %p116 = scmp.eq.s32.totalorder %s22, 0
      %p117 = por %p115, %p116
      %p118 = scmp.le.s32.totalorder 1, %s16
      %p119 = scmp.lt.s32.totalorder %s16, 3
      %p120 = pnand %p118, %p119
      %p121 = pneg %p120
      // Predicated region
      $region9: #{tpu_custom_call.1} parent=5 // pred_check
        _
      $region10: #{tpu_custom_call.1} parent=5 // pred_check_branch
        %123 = sbr.rel (%p120) target = $region12
      $region11: #{tpu_custom_call.1} parent=5 // pred_region
        %s124 = ssub.s32 %s16, 1
        // Predicated region
        $region13: #{tpu_custom_call.1} parent=11 // pred_check
          %p125 = pneg %p63
        $region14: #{tpu_custom_call.1} parent=11 // pred_check_branch
          %127 = sbr.rel (%p125) target = $region16
        $region15: #{tpu_custom_call.1} parent=11 // pred_region
          %s129 = ssub.s32 6144, 6144
          %130 = vsyncadd [#allocation6], %s129
          %s131 = sshll.u32 [#allocation5], 4
          %s132 = int_to_ptr.vmem [resolvable:$true] %s131
          %137 = dma.hbm_to_vmem [thread:$0]  %s1, 6144, %s132, [#allocation6], 128, 128, 8
        $region16: #{tpu_custom_call.1} parent=11 // pred_fallthru
          _
        // Predicated region
        $region17: #{tpu_custom_call.1} parent=11 // pred_check
          %p138 = pneg %p84
        $region18: #{tpu_custom_call.1} parent=11 // pred_check_branch
          %140 = sbr.rel (%p138) target = $region20
        $region19: #{tpu_custom_call.1} parent=11 // pred_region
          %s142 = ssub.s32 64, 64
          %143 = vsyncadd [#allocation6], %s142
          %s145 = sshll.u32 [#allocation7], 4
          %s146 = int_to_ptr.vmem [resolvable:$true] %s145
          %148 = dma.hbm_to_vmem [thread:$0]  %s2, 64, %s146, [#allocation6]
        $region20: #{tpu_custom_call.1} parent=11 // pred_fallthru
          _
      $region12: #{tpu_custom_call.1} parent=5 // pred_fallthru
        _
      %p149 = scmp.lt.s32.totalorder %s16, 2
      // Predicated region
      $region21: #{tpu_custom_call.1} parent=5 // pred_check
        %p150 = pneg %p149
      $region22: #{tpu_custom_call.1} parent=5 // pred_check_branch
        %152 = sbr.rel (%p150) target = $region24
      $region23: #{tpu_custom_call.1} parent=5 // pred_region
        // Predicated region
        $region25: #{tpu_custom_call.1} parent=23 // pred_check
          %p153 = pneg %p36
        $region26: #{tpu_custom_call.1} parent=23 // pred_check_branch
          %155 = sbr.rel (%p153) target = $region28
        $region27: #{tpu_custom_call.1} parent=23 // pred_region
          %s156 = sand.u32 %s26, 1
          %s157 = scalar_lea.sflag [#allocation3], %s156
          %s158 = sand.u32 %s26, 1
          %s159 = smul.addr %s158, 8
          %s160 = scalar_lea.vmem [#allocation2], %s159
          %s162 = ssub.s32 128, 128
          %163 = vsyncadd %s157, %s162
          %s164 = smul.addr %s16, 128
          %s165 = scalar_lea.hbm %s0, %s164
          %s167 = sshll.u32 %s160, 4
          %s168 = int_to_ptr.vmem [resolvable:$true] %s167
          %170 = dma.hbm_to_vmem [thread:$0]  %s165, 128, %s168, %s157
        $region28: #{tpu_custom_call.1} parent=23 // pred_fallthru
          _
      $region24: #{tpu_custom_call.1} parent=5 // pred_fallthru
        _
      %p171 = scmp.le.s32.totalorder 1, %s16
      %p172 = scmp.lt.s32.totalorder %s16, 3
      %p173 = pnand %p171, %p172
      %p174 = pneg %p173
      // Predicated region
      $region29: #{tpu_custom_call.1} parent=5 // pred_check
        _
      $region30: #{tpu_custom_call.1} parent=5 // pred_check_branch
        %176 = sbr.rel (%p173) target = $region32
      $region31: #{tpu_custom_call.1} parent=5 // pred_region
        %s177 = ssub.s32 %s16, 1
        %s178 = sand.u32 %s29, 1
        %s179 = scalar_lea.sflag [#allocation3], %s178
        %s180 = sand.u32 %s29, 1
        %s181 = smul.addr %s180, 8
        %s182 = scalar_lea.vmem [#allocation2], %s181
        // Predicated region
        $region33: #{tpu_custom_call.1} parent=31 // pred_check
          %p183 = pneg %p42
        $region34: #{tpu_custom_call.1} parent=31 // pred_check_branch
          %185 = sbr.rel (%p183) target = $region36
        $region35: #{tpu_custom_call.1} parent=31 // pred_region
          %186 = dma.done %s179, 128
        $region36: #{tpu_custom_call.1} parent=31 // pred_fallthru
          _
        // Predicated region
        $region37: #{tpu_custom_call.1} parent=31 // pred_check
          %p187 = pneg %p63
        $region38: #{tpu_custom_call.1} parent=31 // pred_check_branch
          %189 = sbr.rel (%p187) target = $region40
        $region39: #{tpu_custom_call.1} parent=31 // pred_region
          %190 = dma.done [#allocation6], 6144
        $region40: #{tpu_custom_call.1} parent=31 // pred_fallthru
          _
        // Predicated region
        $region41: #{tpu_custom_call.1} parent=31 // pred_check
          %p191 = pneg %p84
        $region42: #{tpu_custom_call.1} parent=31 // pred_check_branch
          %193 = sbr.rel (%p191) target = $region44
        $region43: #{tpu_custom_call.1} parent=31 // pred_region
          %194 = dma.done [#allocation6], 64
        $region44: #{tpu_custom_call.1} parent=31 // pred_fallthru
          _
        %s195 = sand.u32 %s29, 1
        %s196 = scalar_lea.sflag [#allocation3], %s195
        %s197 = sand.u32 %s29, 1
        %s198 = smul.addr %s197, 8
        %s199 = scalar_lea.vmem [#allocation2], %s198
        %p200 = pneg %p42
        %p201 = pneg %p39
        %p202 = pneg %p63
        %p203 = pneg %p60
        %p204 = pneg %p84
        %p205 = pneg %p81
        %p206 = pneg %p110
        %p207 = pneg %p107
        %s208 = sand.u32 %s97, 1
        %s209 = scalar_lea.sflag [#allocation4], %s208
        %s210 = sand.u32 %s97, 1
        %s211 = smul.addr %s210, 8
        %s212 = scalar_lea.vmem [#allocation8], %s211
        %v214 = vld [vmem:[%s182] sm:$0xff]
        %v215 = vpack.c.bf16 %v214, %v214
        %v216 = vld [vmem:[#allocation5] sm:$0xff]
        %v217 = vld [vmem:[#allocation5 + $0x8] sm:$0xff]
        %v218 = vld [vmem:[#allocation5 + $0x10] sm:$0xff]
        %v219 = vld [vmem:[#allocation5 + $0x18] sm:$0xff]
        %v220 = vld [vmem:[#allocation5 + $0x20] sm:$0xff]
        %v221 = vld [vmem:[#allocation5 + $0x28] sm:$0xff]
        %v222 = vld [vmem:[#allocation5 + $0x30] sm:$0xff]
        %v223 = vld [vmem:[#allocation5 + $0x38] sm:$0xff]
        %v224 = vld [vmem:[#allocation5 + $0x40] sm:$0xff]
        %v225 = vld [vmem:[#allocation5 + $0x48] sm:$0xff]
        %v226 = vld [vmem:[#allocation5 + $0x50] sm:$0xff]
        %v227 = vld [vmem:[#allocation5 + $0x58] sm:$0xff]
        %v228 = vld [vmem:[#allocation5 + $0x60] sm:$0xff]
        %v229 = vld [vmem:[#allocation5 + $0x68] sm:$0xff]
        %v230 = vld [vmem:[#allocation5 + $0x70] sm:$0xff]
        %v231 = vld [vmem:[#allocation5 + $0x78] sm:$0xff]
        %v248 = vunpack.c.l.b16 %v216
        %v249 = vunpack.c.h.b16 %v216
        %v250 = vunpack.c.l.b16 %v217
        %v251 = vunpack.c.h.b16 %v217
        %v252 = vunpack.c.l.b16 %v218
        %v253 = vunpack.c.h.b16 %v218
        %v254 = vunpack.c.l.b16 %v219
        %v255 = vunpack.c.h.b16 %v219
        %v256 = vunpack.c.l.b16 %v220
        %v257 = vunpack.c.h.b16 %v220
        %v258 = vunpack.c.l.b16 %v221
        %v259 = vunpack.c.h.b16 %v221
        %v260 = vunpack.c.l.b16 %v222
        %v261 = vunpack.c.h.b16 %v222
        %v262 = vunpack.c.l.b16 %v223
        %v263 = vunpack.c.h.b16 %v223
        %v264 = vunpack.c.l.b16 %v224
        %v265 = vunpack.c.h.b16 %v224
        %v266 = vunpack.c.l.b16 %v225
        %v267 = vunpack.c.h.b16 %v225
        %v268 = vunpack.c.l.b16 %v226
        %v269 = vunpack.c.h.b16 %v226
        %v270 = vunpack.c.l.b16 %v227
        %v271 = vunpack.c.h.b16 %v227
        %v272 = vunpack.c.l.b16 %v228
        %v273 = vunpack.c.h.b16 %v228
        %v274 = vunpack.c.l.b16 %v229
        %v275 = vunpack.c.h.b16 %v229
        %v276 = vunpack.c.l.b16 %v230
        %v277 = vunpack.c.h.b16 %v230
        %v278 = vunpack.c.l.b16 %v231
        %v279 = vunpack.c.h.b16 %v231
        %v280 = vpack.c.b16 %v250, %v248
        %v281 = vpack.c.b16 %v251, %v249
        %v282 = vpack.c.b16 %v254, %v252
        %v283 = vpack.c.b16 %v255, %v253
        %v284 = vpack.c.b16 %v258, %v256
        %v285 = vpack.c.b16 %v259, %v257
        %v286 = vpack.c.b16 %v262, %v260
        %v287 = vpack.c.b16 %v263, %v261
        %v288 = vpack.c.b16 %v266, %v264
        %v289 = vpack.c.b16 %v267, %v265
        %v290 = vpack.c.b16 %v270, %v268
        %v291 = vpack.c.b16 %v271, %v269
        %v292 = vpack.c.b16 %v274, %v272
        %v293 = vpack.c.b16 %v275, %v273
        %v294 = vpack.c.b16 %v278, %v276
        %v295 = vpack.c.b16 %v279, %v277
        %312 = vmatprep.subr.bf16.mxu0 %v295
        %313 = vmatpush1.bf16.msra.mxu0 %v294
        %314 = vmatprep.subr.bf16.mxu0 %v293
        %315 = vmatpush1.bf16.msra.mxu0 %v292
        %316 = vmatprep.subr.bf16.mxu0 %v291
        %317 = vmatpush1.bf16.msra.mxu0 %v290
        %318 = vmatprep.subr.bf16.mxu0 %v289
        %319 = vmatpush1.bf16.msra.mxu0 %v288
        %320 = vmatprep.subr.bf16.mxu0 %v287
        %321 = vmatpush1.bf16.msra.mxu0 %v286
        %322 = vmatprep.subr.bf16.mxu0 %v285
        %323 = vmatpush1.bf16.msra.mxu0 %v284
        %324 = vmatprep.subr.bf16.mxu0 %v283
        %325 = vmatpush1.bf16.msra.mxu0 %v282
        %326 = vmatprep.subr.bf16.mxu0 %v281
        %327 = vmatpush1.bf16.msra.mxu0 %v280
        %328 = vmatprep.subr.bf16.mxu0 0
        %329 = vmatpush2.bf16.msra.mxu0 0
        %330 = vmatprep.subr.bf16.mxu0 0
        %331 = vmatpush2.bf16.msra.mxu0 0
        %332 = vmatprep.subr.bf16.mxu0 0
        %333 = vmatpush2.bf16.msra.mxu0 0
        %334 = vmatprep.subr.bf16.mxu0 0
        %335 = vmatpush2.bf16.msra.mxu0 0
        %336 = vmatprep.subr.bf16.mxu0 0
        %337 = vmatpush2.bf16.msra.mxu0 0
        %338 = vmatprep.subr.bf16.mxu0 0
        %339 = vmatpush2.bf16.msra.mxu0 0
        %340 = vmatprep.subr.bf16.mxu0 0
        %341 = vmatpush2.bf16.msra.mxu0 0
        %342 = vmatprep.subr.bf16.mxu0 0
        %343 = vmatpush2.bf16.msra.mxu0 0
        %344 = vmatprep.mubr.bf16.mxu0 0
        %345 = vmatmul.mubr.bf16.gmra.mxu0 %v215
        %v346 = vpop.f32.mrf.mxu0
        %v347 = vadd.f32 0.0, %v346
        %v348 = vpop.f32.mrf.mxu0
        %v349 = vadd.f32 0.0, %v348
        %v350 = vpop.f32.mrf.mxu0
        %v351 = vpop.f32.mrf.mxu0
        %352 = vdwg.mxu0
        %v353 = vld [vmem:[#allocation7] sm:$0x1]
        %v354 = vlaneseq
        %v355 = vshrl.u32 %v354, 7
        %v356 = vsub.s32 0, %v355
        %v357 = vrot.slane %v353, %v356
        %v358 = vadd.f32 %v347, %v357
        %v359 = vxor.u32 %v349, 2147483648
        %v360 = vmul.f32 %v359, 1.442695
        %v361 = vpow.pop %v360
        %v362 = vadd.f32 %v361, 1.0
        %v363 = vrcp.pop %v362
        %v364 = vmul.f32 1.0, %v363
        %v365 = vmul.f32 %v214, %v358
        %v366 = vmul.f32 %v365, %v364
        %v367 = vadd.f32 %v366, %v214
        %v368 = vpack.c.bf16 %v367, %v367
        %s369 = scalar_lea.vmem [#allocation5], 128
        %v370 = vld [vmem:[%s369] sm:$0xff]
        %v371 = vld [vmem:[%s369 + $0x8] sm:$0xff]
        %v372 = vld [vmem:[%s369 + $0x10] sm:$0xff]
        %v373 = vld [vmem:[%s369 + $0x18] sm:$0xff]
        %v374 = vld [vmem:[%s369 + $0x20] sm:$0xff]
        %v375 = vld [vmem:[%s369 + $0x28] sm:$0xff]
        %v376 = vld [vmem:[%s369 + $0x30] sm:$0xff]
        %v377 = vld [vmem:[%s369 + $0x38] sm:$0xff]
        %v378 = vld [vmem:[%s369 + $0x40] sm:$0xff]
        %v379 = vld [vmem:[%s369 + $0x48] sm:$0xff]
        %v380 = vld [vmem:[%s369 + $0x50] sm:$0xff]
        %v381 = vld [vmem:[%s369 + $0x58] sm:$0xff]
        %v382 = vld [vmem:[%s369 + $0x60] sm:$0xff]
        %v383 = vld [vmem:[%s369 + $0x68] sm:$0xff]
        %v384 = vld [vmem:[%s369 + $0x70] sm:$0xff]
        %v385 = vld [vmem:[%s369 + $0x78] sm:$0xff]
        %v402 = vunpack.c.l.b16 %v370
        %v403 = vunpack.c.h.b16 %v370
        %v404 = vunpack.c.l.b16 %v371
        %v405 = vunpack.c.h.b16 %v371
        %v406 = vunpack.c.l.b16 %v372
        %v407 = vunpack.c.h.b16 %v372
        %v408 = vunpack.c.l.b16 %v373
        %v409 = vunpack.c.h.b16 %v373
        %v410 = vunpack.c.l.b16 %v374
        %v411 = vunpack.c.h.b16 %v374
        %v412 = vunpack.c.l.b16 %v375
        %v413 = vunpack.c.h.b16 %v375
        %v414 = vunpack.c.l.b16 %v376
        %v415 = vunpack.c.h.b16 %v376
        %v416 = vunpack.c.l.b16 %v377
        %v417 = vunpack.c.h.b16 %v377
        %v418 = vunpack.c.l.b16 %v378
        %v419 = vunpack.c.h.b16 %v378
        %v420 = vunpack.c.l.b16 %v379
        %v421 = vunpack.c.h.b16 %v379
        %v422 = vunpack.c.l.b16 %v380
        %v423 = vunpack.c.h.b16 %v380
        %v424 = vunpack.c.l.b16 %v381
        %v425 = vunpack.c.h.b16 %v381
        %v426 = vunpack.c.l.b16 %v382
        %v427 = vunpack.c.h.b16 %v382
        %v428 = vunpack.c.l.b16 %v383
        %v429 = vunpack.c.h.b16 %v383
        %v430 = vunpack.c.l.b16 %v384
        %v431 = vunpack.c.h.b16 %v384
        %v432 = vunpack.c.l.b16 %v385
        %v433 = vunpack.c.h.b16 %v385
        %v434 = vpack.c.b16 %v404, %v402
        %v435 = vpack.c.b16 %v405, %v403
        %v436 = vpack.c.b16 %v408, %v406
        %v437 = vpack.c.b16 %v409, %v407
        %v438 = vpack.c.b16 %v412, %v410
        %v439 = vpack.c.b16 %v413, %v411
        %v440 = vpack.c.b16 %v416, %v414
        %v441 = vpack.c.b16 %v417, %v415
        %v442 = vpack.c.b16 %v420, %v418
        %v443 = vpack.c.b16 %v421, %v419
        %v444 = vpack.c.b16 %v424, %v422
        %v445 = vpack.c.b16 %v425, %v423
        %v446 = vpack.c.b16 %v428, %v426
        %v447 = vpack.c.b16 %v429, %v427
        %v448 = vpack.c.b16 %v432, %v430
        %v449 = vpack.c.b16 %v433, %v431
        %466 = vmatprep.subr.bf16.mxu0 %v449
        %467 = vmatpush1.bf16.msra.mxu0 %v448
        %468 = vmatprep.subr.bf16.mxu0 %v447
        %469 = vmatpush1.bf16.msra.mxu0 %v446
        %470 = vmatprep.subr.bf16.mxu0 %v445
        %471 = vmatpush1.bf16.msra.mxu0 %v444
        %472 = vmatprep.subr.bf16.mxu0 %v443
        %473 = vmatpush1.bf16.msra.mxu0 %v442
        %474 = vmatprep.subr.bf16.mxu0 %v441
        %475 = vmatpush1.bf16.msra.mxu0 %v440
        %476 = vmatprep.subr.bf16.mxu0 %v439
        %477 = vmatpush1.bf16.msra.mxu0 %v438
        %478 = vmatprep.subr.bf16.mxu0 %v437
        %479 = vmatpush1.bf16.msra.mxu0 %v436
        %480 = vmatprep.subr.bf16.mxu0 %v435
        %481 = vmatpush1.bf16.msra.mxu0 %v434
        %482 = vmatprep.subr.bf16.mxu0 0
        %483 = vmatpush2.bf16.msra.mxu0 0
        %484 = vmatprep.subr.bf16.mxu0 0
        %485 = vmatpush2.bf16.msra.mxu0 0
        %486 = vmatprep.subr.bf16.mxu0 0
        %487 = vmatpush2.bf16.msra.mxu0 0
        %488 = vmatprep.subr.bf16.mxu0 0
        %489 = vmatpush2.bf16.msra.mxu0 0
        %490 = vmatprep.subr.bf16.mxu0 0
        %491 = vmatpush2.bf16.msra.mxu0 0
        %492 = vmatprep.subr.bf16.mxu0 0
        %493 = vmatpush2.bf16.msra.mxu0 0
        %494 = vmatprep.subr.bf16.mxu0 0
        %495 = vmatpush2.bf16.msra.mxu0 0
        %496 = vmatprep.subr.bf16.mxu0 0
        %497 = vmatpush2.bf16.msra.mxu0 0
        %498 = vmatprep.mubr.bf16.mxu0 0
        %499 = vmatmul.mubr.bf16.gmra.mxu0 %v368
        %v500 = vpop.f32.mrf.mxu0
        %v501 = vadd.f32 0.0, %v500
        %v502 = vpop.f32.mrf.mxu0
        %v503 = vadd.f32 0.0, %v502
        %v504 = vpop.f32.mrf.mxu0
        %v505 = vpop.f32.mrf.mxu0
        %506 = vdwg.mxu0
        %v507 = vld [vmem:[#allocation7 + $0x1] sm:$0x1]
        %v508 = vlaneseq
        %v509 = vshrl.u32 %v508, 7
        %v510 = vsub.s32 0, %v509
        %v511 = vrot.slane %v507, %v510
        %v512 = vadd.f32 %v501, %v511
        %v513 = vxor.u32 %v503, 2147483648
        %v514 = vmul.f32 %v513, 1.442695
        %v515 = vpow.pop %v514
        %v516 = vadd.f32 %v515, 1.0
        %v517 = vrcp.pop %v516
        %v518 = vmul.f32 1.0, %v517
        %v519 = vmul.f32 %v214, %v512
        %v520 = vmul.f32 %v519, %v518
        %v521 = vadd.f32 %v520, %v367
        %v522 = vpack.c.bf16 %v521, %v521
        %s523 = scalar_lea.vmem [#allocation5], 256
        %v524 = vld [vmem:[%s523] sm:$0xff]
        %v525 = vld [vmem:[%s523 + $0x8] sm:$0xff]
        %v526 = vld [vmem:[%s523 + $0x10] sm:$0xff]
        %v527 = vld [vmem:[%s523 + $0x18] sm:$0xff]
        %v528 = vld [vmem:[%s523 + $0x20] sm:$0xff]
        %v529 = vld [vmem:[%s523 + $0x28] sm:$0xff]
        %v530 = vld [vmem:[%s523 + $0x30] sm:$0xff]
        %v531 = vld [vmem:[%s523 + $0x38] sm:$0xff]
        %v532 = vld [vmem:[%s523 + $0x40] sm:$0xff]
        %v533 = vld [vmem:[%s523 + $0x48] sm:$0xff]
        %v534 = vld [vmem:[%s523 + $0x50] sm:$0xff]
        %v535 = vld [vmem:[%s523 + $0x58] sm:$0xff]
        %v536 = vld [vmem:[%s523 + $0x60] sm:$0xff]
        %v537 = vld [vmem:[%s523 + $0x68] sm:$0xff]
        %v538 = vld [vmem:[%s523 + $0x70] sm:$0xff]
        %v539 = vld [vmem:[%s523 + $0x78] sm:$0xff]
        %v556 = vunpack.c.l.b16 %v524
        %v557 = vunpack.c.h.b16 %v524
        %v558 = vunpack.c.l.b16 %v525
        %v559 = vunpack.c.h.b16 %v525
        %v560 = vunpack.c.l.b16 %v526
        %v561 = vunpack.c.h.b16 %v526
        %v562 = vunpack.c.l.b16 %v527
        %v563 = vunpack.c.h.b16 %v527
        %v564 = vunpack.c.l.b16 %v528
        %v565 = vunpack.c.h.b16 %v528
        %v566 = vunpack.c.l.b16 %v529
        %v567 = vunpack.c.h.b16 %v529
        %v568 = vunpack.c.l.b16 %v530
        %v569 = vunpack.c.h.b16 %v530
        %v570 = vunpack.c.l.b16 %v531
        %v571 = vunpack.c.h.b16 %v531
        %v572 = vunpack.c.l.b16 %v532
        %v573 = vunpack.c.h.b16 %v532
        %v574 = vunpack.c.l.b16 %v533
        %v575 = vunpack.c.h.b16 %v533
        %v576 = vunpack.c.l.b16 %v534
        %v577 = vunpack.c.h.b16 %v534
        %v578 = vunpack.c.l.b16 %v535
        %v579 = vunpack.c.h.b16 %v535
        %v580 = vunpack.c.l.b16 %v536
        %v581 = vunpack.c.h.b16 %v536
        %v582 = vunpack.c.l.b16 %v537
        %v583 = vunpack.c.h.b16 %v537
        %v584 = vunpack.c.l.b16 %v538
        %v585 = vunpack.c.h.b16 %v538
        %v586 = vunpack.c.l.b16 %v539
        %v587 = vunpack.c.h.b16 %v539
        %v588 = vpack.c.b16 %v558, %v556
        %v589 = vpack.c.b16 %v559, %v557
        %v590 = vpack.c.b16 %v562, %v560
        %v591 = vpack.c.b16 %v563, %v561
        %v592 = vpack.c.b16 %v566, %v564
        %v593 = vpack.c.b16 %v567, %v565
        %v594 = vpack.c.b16 %v570, %v568
        %v595 = vpack.c.b16 %v571, %v569
        %v596 = vpack.c.b16 %v574, %v572
        %v597 = vpack.c.b16 %v575, %v573
        %v598 = vpack.c.b16 %v578, %v576
        %v599 = vpack.c.b16 %v579, %v577
        %v600 = vpack.c.b16 %v582, %v580
        %v601 = vpack.c.b16 %v583, %v581
        %v602 = vpack.c.b16 %v586, %v584
        %v603 = vpack.c.b16 %v587, %v585
        %620 = vmatprep.subr.bf16.mxu0 %v603
        %621 = vmatpush1.bf16.msra.mxu0 %v602
        %622 = vmatprep.subr.bf16.mxu0 %v601
        %623 = vmatpush1.bf16.msra.mxu0 %v600
        %624 = vmatprep.subr.bf16.mxu0 %v599
        %625 = vmatpush1.bf16.msra.mxu0 %v598
        %626 = vmatprep.subr.bf16.mxu0 %v597
        %627 = vmatpush1.bf16.msra.mxu0 %v596
        %628 = vmatprep.subr.bf16.mxu0 %v595
        %629 = vmatpush1.bf16.msra.mxu0 %v594
        %630 = vmatprep.subr.bf16.mxu0 %v593
        %631 = vmatpush1.bf16.msra.mxu0 %v592
        %632 = vmatprep.subr.bf16.mxu0 %v591
        %633 = vmatpush1.bf16.msra.mxu0 %v590
        %634 = vmatprep.subr.bf16.mxu0 %v589
        %635 = vmatpush1.bf16.msra.mxu0 %v588
        %636 = vmatprep.subr.bf16.mxu0 0
        %637 = vmatpush2.bf16.msra.mxu0 0
        %638 = vmatprep.subr.bf16.mxu0 0
        %639 = vmatpush2.bf16.msra.mxu0 0
        %640 = vmatprep.subr.bf16.mxu0 0
        %641 = vmatpush2.bf16.msra.mxu0 0
        %642 = vmatprep.subr.bf16.mxu0 0
        %643 = vmatpush2.bf16.msra.mxu0 0
        %644 = vmatprep.subr.bf16.mxu0 0
        %645 = vmatpush2.bf16.msra.mxu0 0
        %646 = vmatprep.subr.bf16.mxu0 0
        %647 = vmatpush2.bf16.msra.mxu0 0
        %648 = vmatprep.subr.bf16.mxu0 0
        %649 = vmatpush2.bf16.msra.mxu0 0
        %650 = vmatprep.subr.bf16.mxu0 0
        %651 = vmatpush2.bf16.msra.mxu0 0
        %652 = vmatprep.mubr.bf16.mxu0 0
        %653 = vmatmul.mubr.bf16.gmra.mxu0 %v522
        %v654 = vpop.f32.mrf.mxu0
        %v655 = vadd.f32 0.0, %v654
        %v656 = vpop.f32.mrf.mxu0
        %v657 = vadd.f32 0.0, %v656
        %v658 = vpop.f32.mrf.mxu0
        %v659 = vpop.f32.mrf.mxu0
        %660 = vdwg.mxu0
        %v661 = vld [vmem:[#allocation7 + $0x2] sm:$0x1]
        %v662 = vlaneseq
        %v663 = vshrl.u32 %v662, 7
        %v664 = vsub.s32 0, %v663
        %v665 = vrot.slane %v661, %v664
        %v666 = vadd.f32 %v655, %v665
        %v667 = vxor.u32 %v657, 2147483648
        %v668 = vmul.f32 %v667, 1.442695
        %v669 = vpow.pop %v668
        %v670 = vadd.f32 %v669, 1.0
        %v671 = vrcp.pop %v670
        %v672 = vmul.f32 1.0, %v671
        %v673 = vmul.f32 %v214, %v666
        %v674 = vmul.f32 %v673, %v672
        %v675 = vadd.f32 %v674, %v521
        %676 = vst [vmem:[%s212] sm:$0xff] %v675
        %s677 = sand.u32 %s97, 1
        %s678 = scalar_lea.sflag [#allocation4], %s677
        %s679 = sand.u32 %s97, 1
        %s680 = smul.addr %s679, 8
        %s681 = scalar_lea.vmem [#allocation8], %s680
        // Predicated region
        $region45: #{tpu_custom_call.1} parent=31 // pred_check
          %p682 = pneg %p107
        $region46: #{tpu_custom_call.1} parent=31 // pred_check_branch
          %684 = sbr.rel (%p682) target = $region48
        $region47: #{tpu_custom_call.1} parent=31 // pred_region
          %s686 = ssub.s32 128, 128
          %687 = vsyncadd %s678, %s686
          %s688 = smul.addr %s21, 128
          %s689 = scalar_lea.hbm %s3, %s688
          %s691 = sshll.u32 %s681, 4
          %s692 = int_to_ptr.vmem [resolvable:$true] %s691
          %694 = dma.vmem_to_hbm [thread:$0]  %s692, 128, %s689, %s678
        $region48: #{tpu_custom_call.1} parent=31 // pred_fallthru
          _
      $region32: #{tpu_custom_call.1} parent=5 // pred_fallthru
        _
      %p695 = scmp.le.s32.totalorder 2, %s16
      // Predicated region
      $region49: #{tpu_custom_call.1} parent=5 // pred_check
        %p696 = pneg %p695
      $region50: #{tpu_custom_call.1} parent=5 // pred_check_branch
        %698 = sbr.rel (%p696) target = $region52
      $region51: #{tpu_custom_call.1} parent=5 // pred_region
        %s699 = ssub.s32 %s16, 2
        // Predicated region
        $region53: #{tpu_custom_call.1} parent=51 // pred_check
          %p700 = pneg %p113
        $region54: #{tpu_custom_call.1} parent=51 // pred_check_branch
          %702 = sbr.rel (%p700) target = $region56
        $region55: #{tpu_custom_call.1} parent=51 // pred_region
          %s703 = sand.u32 %s98, 1
          %s704 = scalar_lea.sflag [#allocation4], %s703
          %s705 = sand.u32 %s98, 1
          %s706 = smul.addr %s705, 8
          %s707 = scalar_lea.vmem [#allocation8], %s706
          %708 = dma.done %s704, 128
        $region56: #{tpu_custom_call.1} parent=51 // pred_fallthru
          _
      $region52: #{tpu_custom_call.1} parent=5 // pred_fallthru
        _
    $region6: #{tpu_custom_call.1} parent=1 // loop_footer
      %s20 = sadd.s32 1, %s16
    $region7: #{tpu_custom_call.1} parent=1 // loop_footer_branch
      %15 = sbr.rel target = $region3
    $region8: #{tpu_custom_call.1} parent=1 // loop_exit
      _
    %709 = vsyncpa [#allocation3], 1
    %s710 = scalar_lea.sflag [#allocation3], 1
    %711 = vsyncpa %s710, 1
    %712 = vsyncpa [#allocation6], 1
    %713 = vsyncpa [#allocation4], 1
    %s714 = scalar_lea.sflag [#allocation4], 1
    %715 = vsyncpa %s714, 1

</llo_original>
